<compile_context>
chip_gen: v5e
topology: v5e:2x2
jax: 0.10.0
libtpu: 0.0.40
codegen_flags: <defaults>
</compile_context>

<pallas_src>
import functools

import jax
import jax.numpy as jnp
from jax.experimental import pallas as pl
from jax.experimental.pallas import tpu as pltpu


def _round_up(x, m):
    return ((x + m - 1) // m) * m


def _gnn_layer_kernel(x_ref, adj_ref, xh_ref, a_src_ref, a_dst_ref,
                      b_gat_ref, wp_ref, ws_ref, b_ps_ref, out_ref,
                      *, num_heads, n_nodes):
    """One destination-row tile of one layer: all heads + proj + skip fused."""
    adjf = adj_ref[...].astype(jnp.float32)            # [TM, N] 0/1 (edge j -> i)
    bias = (adjf - 1.0) * 1e30                          # 0 on edges, -1e30 off-edge
    a_dst_all = a_dst_ref[...]                          # [TM, H] f32
    a_src_all = a_src_ref[...]                          # [H,  N] f32

    acc = jnp.zeros(out_ref.shape, jnp.float32)         # [TM, Dp] local accumulator
    for h in range(num_heads):                          # static unroll (H small)
        e = a_dst_all[:, h:h + 1] + a_src_all[h:h + 1, :]      # [TM, N]
        e = jnp.maximum(e, 0.2 * e) + bias                      # LeakyReLU(0.2) + mask
        m = jnp.max(e, axis=-1, keepdims=True)                  # [TM, 1]
        p = jnp.exp(e - m) * adjf                               # exact 0 off-edge
        s = jnp.sum(p, axis=-1, keepdims=True)
        denom = jnp.where(s > 0.0, s, 1.0)                      # isolated rows -> 0
        alpha = (p * pl.reciprocal(denom, approx=True)).astype(jnp.bfloat16)
        xh_h = xh_ref[h * n_nodes:(h + 1) * n_nodes, :]         # [N, Dp] bf16
        acc = acc + jnp.dot(alpha, xh_h, preferred_element_type=jnp.float32)

    # concat=False -> mean over heads, + GATConv bias, then .relu()
    gat = acc * (1.0 / num_heads) + b_gat_ref[...]
    gat = jnp.maximum(gat, 0.0)
    # projection + skip as two accumulating dots (no lane-axis concat)
    out = jnp.dot(gat.astype(jnp.bfloat16), wp_ref[...],
                  preferred_element_type=jnp.float32)
    out = out + jnp.dot(x_ref[...], ws_ref[...],
                        preferred_element_type=jnp.float32)
    out_ref[...] = (out + b_ps_ref[...]).astype(out_ref.dtype)


def gnn_forward(x, adj, layer_params, *, num_heads, block_m=64):
    """x: [N, D] f32, adj: dense [N, N] mask (adj[i, j]=1 iff edge j -> i)."""
    n, d = x.shape
    dp = _round_up(max(d, 128), 128)
    tm = min(block_m, n)
    assert n % tm == 0 and tm % 32 == 0, "row tile must divide N and be 32-aligned"
    grid = (n // tm,)

    # Pad the feature/lane axis once (padded channels are exactly 0 and stay 0).
    xp = jnp.zeros((n, dp), jnp.bfloat16).at[:, :d].set(x.astype(jnp.bfloat16))
    adj_i8 = adj.astype(jnp.int8)                       # int8 halves the O(N^2) DMA

    kernel = functools.partial(_gnn_layer_kernel, num_heads=num_heads, n_nodes=n)

    layer_call = pl.pallas_call(
        kernel,
        out_shape=jax.ShapeDtypeStruct((n, dp), jnp.bfloat16),
        grid_spec=pltpu.PrefetchScalarGridSpec(
            num_scalar_prefetch=0,
            grid=grid,
            in_specs=[
                pl.BlockSpec((tm, dp), lambda i: (i, 0)),             # x dst-row tile
                pl.BlockSpec((tm, n), lambda i: (i, 0)),              # adj row panel (int8)
                pl.BlockSpec((num_heads * n, dp), lambda i: (0, 0)),  # xh all heads (resident)
                pl.BlockSpec((num_heads, n), lambda i: (0, 0)),       # a_src rows
                pl.BlockSpec((tm, num_heads), lambda i: (i, 0)),      # a_dst tile
                pl.BlockSpec((1, dp), lambda i: (0, 0)),              # GAT bias
                pl.BlockSpec((dp, dp), lambda i: (0, 0)),             # W_proj^T
                pl.BlockSpec((dp, dp), lambda i: (0, 0)),             # W_skip^T
                pl.BlockSpec((1, dp), lambda i: (0, 0)),              # b_proj + b_skip
            ],
            out_specs=pl.BlockSpec((tm, dp), lambda i: (i, 0)),
        ),
        compiler_params=pltpu.CompilerParams(
            dimension_semantics=("parallel",),
            # ~48 MiB: above the 32 MiB default for v5e/v6e, still safe on v7x (64 MiB).
            vmem_limit_bytes=48 * 1024 * 1024,
        ),
    )

    for p in layer_params:
        # Per-layer GAT linear + attention scalars, computed ONCE (small XLA
        # matmuls) instead of per row tile / per head inside the kernel.
        xs = xp[:, :d].astype(jnp.float32)
        xh = jnp.einsum("nd,hdo->hno", xs, p["w_gat"])          # [H, N, d] f32
        a_src = jnp.einsum("hnd,hd->hn", xh, p["att_src"])       # [H, N]
        a_dst = jnp.einsum("hnd,hd->nh", xh, p["att_dst"])       # [N, H]
        xh_p = (jnp.zeros((num_heads, n, dp), jnp.bfloat16)
                .at[:, :, :d].set(xh.astype(jnp.bfloat16))
                .reshape(num_heads * n, dp))                     # heads stacked on rows
        xp = layer_call(xp, adj_i8, xh_p, a_src, a_dst,
                        p["b_gat"], p["wp_t"], p["ws_t"], p["b_ps"])

    return xp[:, :d].astype(jnp.float32)


def init_params(key, hidden, num_layers, num_heads):
    """Parameters at their PyTorch-module shapes."""
    d, h = hidden, num_heads
    params = []
    for _ in range(num_layers):
        keys = jax.random.split(key, 8)
        key = keys[0]
        s = 1.0 / jnp.sqrt(jnp.float32(d))
        params.append(dict(
            w_gat=jax.random.normal(keys[1], (h * d, d), jnp.float32) * s,  # [H*D_out, D_in]
            att_src=jax.random.normal(keys[2], (h, d), jnp.float32) * s,
            att_dst=jax.random.normal(keys[3], (h, d), jnp.float32) * s,
            b_gat=jnp.zeros((d,), jnp.float32),
            w_proj=jax.random.normal(keys[4], (d, d), jnp.float32) * s,     # [out, in]
            b_proj=jax.random.normal(keys[5], (d,), jnp.float32) * 0.01,
            w_skip=jax.random.normal(keys[6], (d, d), jnp.float32) * s,
            b_skip=jax.random.normal(keys[7], (d,), jnp.float32) * 0.01,
        ))
    return params


def prepare_layer_params(p, num_heads, d, dp):
    """Per-head weight views; pad proj/skip/bias to Dp; cast MXU operands to bf16."""
    h = num_heads
    # per-head [D_in, D_out] so that x @ w[h] == (x @ W^T).reshape(N, H, D_out)[:, h]
    w = p["w_gat"].reshape(h, d, d).transpose(0, 2, 1)              # [H, D_in, D_out]
    b_gat = jnp.zeros((1, dp), jnp.float32).at[0, :d].set(p["b_gat"])
    wp_t = jnp.zeros((dp, dp), jnp.float32).at[:d, :d].set(p["w_proj"].T)
    ws_t = jnp.zeros((dp, dp), jnp.float32).at[:d, :d].set(p["w_skip"].T)
    b_ps = jnp.zeros((1, dp), jnp.float32).at[0, :d].set(p["b_proj"] + p["b_skip"])
    return dict(
        w_gat=w,                          # [H, d, d] f32 (wrapper precompute)
        att_src=p["att_src"],             # [H, d]
        att_dst=p["att_dst"],             # [H, d]
        b_gat=b_gat,                      # [1, Dp] f32
        wp_t=wp_t.astype(jnp.bfloat16),   # [Dp, Dp] bf16
        ws_t=ws_t.astype(jnp.bfloat16),   # [Dp, Dp] bf16
        b_ps=b_ps,                        # [1, Dp] f32
    )


if __name__ == "__main__":
    num_nodes = 128
    hidden_channels = 32
    num_layers = 2
    num_heads = 4

    key = jax.random.PRNGKey(0)
    k_x, k_p = jax.random.split(key)

    # Node features [N, D]
    x = jax.random.normal(k_x, (num_nodes, hidden_channels), jnp.float32)

    # edge_index [2, E]: bidirectional ring graph (256 edges)
    src = jnp.arange(num_nodes, dtype=jnp.int32)
    dst = (src + 1) % num_nodes
    edge_index = jnp.concatenate(
        [jnp.stack([src, dst], axis=0), jnp.stack([dst, src], axis=0)], axis=1)

    # Dense adjacency mask: adj[i, j] = 1 iff edge j -> i
    # (add_self_loops=False in the reference module -> no diagonal added).
    adj = jnp.zeros((num_nodes, num_nodes), jnp.float32)
    adj = adj.at[edge_index[1], edge_index[0]].set(1.0)

    raw_params = init_params(k_p, hidden_channels, num_layers, num_heads)
    dp = _round_up(max(hidden_channels, 128), 128)
    layers = [prepare_layer_params(p, num_heads, hidden_channels, dp)
              for p in raw_params]

    # block_m=64 -> 2 row tiles on the "parallel" axis (keeps both v7x TCs fed;
    # the extra step is negligible on single-TC v5e/v6e).
    fwd = jax.jit(functools.partial(gnn_forward, num_heads=num_heads, block_m=64))
    out = jax.block_until_ready(fwd(x, adj, layers))
    assert out.shape == (num_nodes, hidden_channels)
    assert bool(jnp.all(jnp.isfinite(out)))
    print("KERNEL_OK")
</pallas_src>

<mosaic_0001>
module attributes {stable_mosaic.version = 11 : i64} {
  func.func @_gnn_layer_kernel(%arg0: i32, %arg1: memref<64x128xbf16, #tpu.memory_space<vmem>>, %arg2: memref<64x128xi8, #tpu.memory_space<vmem>>, %arg3: memref<512x128xbf16, #tpu.memory_space<vmem>>, %arg4: memref<4x128xf32, #tpu.memory_space<vmem>>, %arg5: memref<64x4xf32, #tpu.memory_space<vmem>>, %arg6: memref<1x128xf32, #tpu.memory_space<vmem>>, %arg7: memref<128x128xbf16, #tpu.memory_space<vmem>>, %arg8: memref<128x128xbf16, #tpu.memory_space<vmem>>, %arg9: memref<1x128xf32, #tpu.memory_space<vmem>>, %arg10: memref<64x128xbf16, #tpu.memory_space<vmem>>) attributes {dimension_semantics = [#tpu.dimension_semantics<parallel>], iteration_bounds = array<i64: 2>, scalar_prefetch = 0 : i64, scratch_operands = 0 : i64, tpu.core_type = #tpu.core_type<tc>, window_params = [{transform_indices = @transform_0, window_bounds = array<i64: 64, 128>}, {transform_indices = @transform_1, window_bounds = array<i64: 64, 128>}, {pipeline_mode = #tpu.pipeline_mode<synchronous>, transform_indices = @transform_2, window_bounds = array<i64: 512, 128>}, {pipeline_mode = #tpu.pipeline_mode<synchronous>, transform_indices = @transform_3, window_bounds = array<i64: 4, 128>}, {transform_indices = @transform_4, window_bounds = array<i64: 64, 4>}, {pipeline_mode = #tpu.pipeline_mode<synchronous>, transform_indices = @transform_5, window_bounds = array<i64: 1, 128>}, {pipeline_mode = #tpu.pipeline_mode<synchronous>, transform_indices = @transform_6, window_bounds = array<i64: 128, 128>}, {pipeline_mode = #tpu.pipeline_mode<synchronous>, transform_indices = @transform_7, window_bounds = array<i64: 128, 128>}, {pipeline_mode = #tpu.pipeline_mode<synchronous>, transform_indices = @transform_8, window_bounds = array<i64: 1, 128>}, {transform_indices = @transform_9, window_bounds = array<i64: 64, 128>}]} {
    %c0 = arith.constant 0 : index
    %c0_0 = arith.constant 0 : index
    %0 = vector.load %arg2[%c0, %c0_0] : memref<64x128xi8, #tpu.memory_space<vmem>>, vector<64x128xi8>
    %1 = arith.sitofp %0 : vector<64x128xi8> to vector<64x128xf32>
    %cst = arith.constant 1.000000e+00 : f32
    %2 = vector.broadcast %cst : f32 to vector<64x128xf32>
    %3 = arith.subf %1, %2 : vector<64x128xf32>
    %cst_1 = arith.constant 1.000000e+30 : f32
    %4 = vector.broadcast %cst_1 : f32 to vector<64x128xf32>
    %5 = arith.mulf %3, %4 : vector<64x128xf32>
    %c0_2 = arith.constant 0 : index
    %c0_3 = arith.constant 0 : index
    %6 = vector.load %arg5[%c0_2, %c0_3] : memref<64x4xf32, #tpu.memory_space<vmem>>, vector<64x4xf32>
    %c0_4 = arith.constant 0 : index
    %c0_5 = arith.constant 0 : index
    %7 = vector.load %arg4[%c0_4, %c0_5] : memref<4x128xf32, #tpu.memory_space<vmem>>, vector<4x128xf32>
    %cst_6 = arith.constant 0.000000e+00 : f32
    %8 = vector.broadcast %cst_6 : f32 to vector<64x128xf32>
    %9 = vector.extract_strided_slice %6 {offsets = [0, 0], sizes = [64, 1], strides = [1, 1]} : vector<64x4xf32> to vector<64x1xf32>
    %10 = vector.extract_strided_slice %7 {offsets = [0, 0], sizes = [1, 128], strides = [1, 1]} : vector<4x128xf32> to vector<1x128xf32>
    %11 = vector.broadcast %9 : vector<64x1xf32> to vector<64x128xf32>
    %12 = vector.broadcast %10 : vector<1x128xf32> to vector<64x128xf32>
    %13 = arith.addf %11, %12 : vector<64x128xf32>
    %cst_7 = arith.constant 2.000000e-01 : f32
    %14 = vector.broadcast %cst_7 : f32 to vector<64x128xf32>
    %15 = arith.mulf %14, %13 : vector<64x128xf32>
    %16 = arith.maximumf %13, %15 : vector<64x128xf32>
    %17 = arith.addf %16, %5 : vector<64x128xf32>
    %cst_8 = arith.constant dense<0xFF800000> : vector<64xf32>
    %18 = vector.multi_reduction <maximumf>, %17, %cst_8 [1] : vector<64x128xf32> to vector<64xf32>
    %19 = vector.shape_cast %18 : vector<64xf32> to vector<64x1xf32>
    %20 = vector.broadcast %19 : vector<64x1xf32> to vector<64x128xf32>
    %21 = arith.subf %17, %20 : vector<64x128xf32>
    %22 = math.exp %21 : vector<64x128xf32>
    %23 = arith.mulf %22, %1 : vector<64x128xf32>
    %cst_9 = arith.constant dense<0.000000e+00> : vector<64xf32>
    %24 = vector.multi_reduction <add>, %23, %cst_9 [1] : vector<64x128xf32> to vector<64xf32>
    %25 = vector.shape_cast %24 : vector<64xf32> to vector<64x1xf32>
    %cst_10 = arith.constant 0.000000e+00 : f32
    %26 = vector.broadcast %cst_10 : f32 to vector<64x1xf32>
    %27 = arith.cmpf ogt, %25, %26 : vector<64x1xf32>
    %cst_11 = arith.constant 1.000000e+00 : f32
    %28 = vector.broadcast %cst_11 : f32 to vector<64x1xf32>
    %29 = arith.select %27, %25, %28 : vector<64x1xi1>, vector<64x1xf32>
    %30 = tpu.reciprocal %29 {approx = true} : vector<64x1xf32> -> vector<64x1xf32>
    %31 = vector.broadcast %30 : vector<64x1xf32> to vector<64x128xf32>
    %32 = arith.mulf %23, %31 : vector<64x128xf32>
    %33 = arith.truncf %32 : vector<64x128xf32> to vector<64x128xbf16>
    %c0_12 = arith.constant 0 : index
    %c0_13 = arith.constant 0 : index
    %34 = vector.load %arg3[%c0_12, %c0_13] : memref<512x128xbf16, #tpu.memory_space<vmem>>, vector<128x128xbf16>
    %cst_14 = arith.constant dense<0.000000e+00> : vector<64x128xf32>
    %35 = tpu.matmul %33, %34, %cst_14 {dimension_numbers = #tpu.dot_dimension_numbers<[1], [0], [0], [1], [0, 0, 1, 1], [], []>} : vector<64x128xbf16>, vector<128x128xbf16>, vector<64x128xf32> -> vector<64x128xf32>
    %36 = arith.addf %8, %35 : vector<64x128xf32>
    %37 = vector.extract_strided_slice %6 {offsets = [0, 1], sizes = [64, 1], strides = [1, 1]} : vector<64x4xf32> to vector<64x1xf32>
    %38 = vector.extract_strided_slice %7 {offsets = [1, 0], sizes = [1, 128], strides = [1, 1]} : vector<4x128xf32> to vector<1x128xf32>
    %39 = vector.broadcast %37 : vector<64x1xf32> to vector<64x128xf32>
    %40 = vector.broadcast %38 : vector<1x128xf32> to vector<64x128xf32>
    %41 = arith.addf %39, %40 : vector<64x128xf32>
    %cst_15 = arith.constant 2.000000e-01 : f32
    %42 = vector.broadcast %cst_15 : f32 to vector<64x128xf32>
    %43 = arith.mulf %42, %41 : vector<64x128xf32>
    %44 = arith.maximumf %41, %43 : vector<64x128xf32>
    %45 = arith.addf %44, %5 : vector<64x128xf32>
    %cst_16 = arith.constant dense<0xFF800000> : vector<64xf32>
    %46 = vector.multi_reduction <maximumf>, %45, %cst_16 [1] : vector<64x128xf32> to vector<64xf32>
    %47 = vector.shape_cast %46 : vector<64xf32> to vector<64x1xf32>
    %48 = vector.broadcast %47 : vector<64x1xf32> to vector<64x128xf32>
    %49 = arith.subf %45, %48 : vector<64x128xf32>
    %50 = math.exp %49 : vector<64x128xf32>
    %51 = arith.mulf %50, %1 : vector<64x128xf32>
    %cst_17 = arith.constant dense<0.000000e+00> : vector<64xf32>
    %52 = vector.multi_reduction <add>, %51, %cst_17 [1] : vector<64x128xf32> to vector<64xf32>
    %53 = vector.shape_cast %52 : vector<64xf32> to vector<64x1xf32>
    %cst_18 = arith.constant 0.000000e+00 : f32
    %54 = vector.broadcast %cst_18 : f32 to vector<64x1xf32>
    %55 = arith.cmpf ogt, %53, %54 : vector<64x1xf32>
    %cst_19 = arith.constant 1.000000e+00 : f32
    %56 = vector.broadcast %cst_19 : f32 to vector<64x1xf32>
    %57 = arith.select %55, %53, %56 : vector<64x1xi1>, vector<64x1xf32>
    %58 = tpu.reciprocal %57 {approx = true} : vector<64x1xf32> -> vector<64x1xf32>
    %59 = vector.broadcast %58 : vector<64x1xf32> to vector<64x128xf32>
    %60 = arith.mulf %51, %59 : vector<64x128xf32>
    %61 = arith.truncf %60 : vector<64x128xf32> to vector<64x128xbf16>
    %c128 = arith.constant 128 : index
    %c0_20 = arith.constant 0 : index
    %62 = vector.load %arg3[%c128, %c0_20] : memref<512x128xbf16, #tpu.memory_space<vmem>>, vector<128x128xbf16>
    %cst_21 = arith.constant dense<0.000000e+00> : vector<64x128xf32>
    %63 = tpu.matmul %61, %62, %cst_21 {dimension_numbers = #tpu.dot_dimension_numbers<[1], [0], [0], [1], [0, 0, 1, 1], [], []>} : vector<64x128xbf16>, vector<128x128xbf16>, vector<64x128xf32> -> vector<64x128xf32>
    %64 = arith.addf %36, %63 : vector<64x128xf32>
    %65 = vector.extract_strided_slice %6 {offsets = [0, 2], sizes = [64, 1], strides = [1, 1]} : vector<64x4xf32> to vector<64x1xf32>
    %66 = vector.extract_strided_slice %7 {offsets = [2, 0], sizes = [1, 128], strides = [1, 1]} : vector<4x128xf32> to vector<1x128xf32>
    %67 = vector.broadcast %65 : vector<64x1xf32> to vector<64x128xf32>
    %68 = vector.broadcast %66 : vector<1x128xf32> to vector<64x128xf32>
    %69 = arith.addf %67, %68 : vector<64x128xf32>
    %cst_22 = arith.constant 2.000000e-01 : f32
    %70 = vector.broadcast %cst_22 : f32 to vector<64x128xf32>
    %71 = arith.mulf %70, %69 : vector<64x128xf32>
    %72 = arith.maximumf %69, %71 : vector<64x128xf32>
    %73 = arith.addf %72, %5 : vector<64x128xf32>
    %cst_23 = arith.constant dense<0xFF800000> : vector<64xf32>
    %74 = vector.multi_reduction <maximumf>, %73, %cst_23 [1] : vector<64x128xf32> to vector<64xf32>
    %75 = vector.shape_cast %74 : vector<64xf32> to vector<64x1xf32>
    %76 = vector.broadcast %75 : vector<64x1xf32> to vector<64x128xf32>
    %77 = arith.subf %73, %76 : vector<64x128xf32>
    %78 = math.exp %77 : vector<64x128xf32>
    %79 = arith.mulf %78, %1 : vector<64x128xf32>
    %cst_24 = arith.constant dense<0.000000e+00> : vector<64xf32>
    %80 = vector.multi_reduction <add>, %79, %cst_24 [1] : vector<64x128xf32> to vector<64xf32>
    %81 = vector.shape_cast %80 : vector<64xf32> to vector<64x1xf32>
    %cst_25 = arith.constant 0.000000e+00 : f32
    %82 = vector.broadcast %cst_25 : f32 to vector<64x1xf32>
    %83 = arith.cmpf ogt, %81, %82 : vector<64x1xf32>
    %cst_26 = arith.constant 1.000000e+00 : f32
    %84 = vector.broadcast %cst_26 : f32 to vector<64x1xf32>
    %85 = arith.select %83, %81, %84 : vector<64x1xi1>, vector<64x1xf32>
    %86 = tpu.reciprocal %85 {approx = true} : vector<64x1xf32> -> vector<64x1xf32>
    %87 = vector.broadcast %86 : vector<64x1xf32> to vector<64x128xf32>
    %88 = arith.mulf %79, %87 : vector<64x128xf32>
    %89 = arith.truncf %88 : vector<64x128xf32> to vector<64x128xbf16>
    %c256 = arith.constant 256 : index
    %c0_27 = arith.constant 0 : index
    %90 = vector.load %arg3[%c256, %c0_27] : memref<512x128xbf16, #tpu.memory_space<vmem>>, vector<128x128xbf16>
    %cst_28 = arith.constant dense<0.000000e+00> : vector<64x128xf32>
    %91 = tpu.matmul %89, %90, %cst_28 {dimension_numbers = #tpu.dot_dimension_numbers<[1], [0], [0], [1], [0, 0, 1, 1], [], []>} : vector<64x128xbf16>, vector<128x128xbf16>, vector<64x128xf32> -> vector<64x128xf32>
    %92 = arith.addf %64, %91 : vector<64x128xf32>
    %93 = vector.extract_strided_slice %6 {offsets = [0, 3], sizes = [64, 1], strides = [1, 1]} : vector<64x4xf32> to vector<64x1xf32>
    %94 = vector.extract_strided_slice %7 {offsets = [3, 0], sizes = [1, 128], strides = [1, 1]} : vector<4x128xf32> to vector<1x128xf32>
    %95 = vector.broadcast %93 : vector<64x1xf32> to vector<64x128xf32>
    %96 = vector.broadcast %94 : vector<1x128xf32> to vector<64x128xf32>
    %97 = arith.addf %95, %96 : vector<64x128xf32>
    %cst_29 = arith.constant 2.000000e-01 : f32
    %98 = vector.broadcast %cst_29 : f32 to vector<64x128xf32>
    %99 = arith.mulf %98, %97 : vector<64x128xf32>
    %100 = arith.maximumf %97, %99 : vector<64x128xf32>
    %101 = arith.addf %100, %5 : vector<64x128xf32>
    %cst_30 = arith.constant dense<0xFF800000> : vector<64xf32>
    %102 = vector.multi_reduction <maximumf>, %101, %cst_30 [1] : vector<64x128xf32> to vector<64xf32>
    %103 = vector.shape_cast %102 : vector<64xf32> to vector<64x1xf32>
    %104 = vector.broadcast %103 : vector<64x1xf32> to vector<64x128xf32>
    %105 = arith.subf %101, %104 : vector<64x128xf32>
    %106 = math.exp %105 : vector<64x128xf32>
    %107 = arith.mulf %106, %1 : vector<64x128xf32>
    %cst_31 = arith.constant dense<0.000000e+00> : vector<64xf32>
    %108 = vector.multi_reduction <add>, %107, %cst_31 [1] : vector<64x128xf32> to vector<64xf32>
    %109 = vector.shape_cast %108 : vector<64xf32> to vector<64x1xf32>
    %cst_32 = arith.constant 0.000000e+00 : f32
    %110 = vector.broadcast %cst_32 : f32 to vector<64x1xf32>
    %111 = arith.cmpf ogt, %109, %110 : vector<64x1xf32>
    %cst_33 = arith.constant 1.000000e+00 : f32
    %112 = vector.broadcast %cst_33 : f32 to vector<64x1xf32>
    %113 = arith.select %111, %109, %112 : vector<64x1xi1>, vector<64x1xf32>
    %114 = tpu.reciprocal %113 {approx = true} : vector<64x1xf32> -> vector<64x1xf32>
    %115 = vector.broadcast %114 : vector<64x1xf32> to vector<64x128xf32>
    %116 = arith.mulf %107, %115 : vector<64x128xf32>
    %117 = arith.truncf %116 : vector<64x128xf32> to vector<64x128xbf16>
    %c384 = arith.constant 384 : index
    %c0_34 = arith.constant 0 : index
    %118 = vector.load %arg3[%c384, %c0_34] : memref<512x128xbf16, #tpu.memory_space<vmem>>, vector<128x128xbf16>
    %cst_35 = arith.constant dense<0.000000e+00> : vector<64x128xf32>
    %119 = tpu.matmul %117, %118, %cst_35 {dimension_numbers = #tpu.dot_dimension_numbers<[1], [0], [0], [1], [0, 0, 1, 1], [], []>} : vector<64x128xbf16>, vector<128x128xbf16>, vector<64x128xf32> -> vector<64x128xf32>
    %120 = arith.addf %92, %119 : vector<64x128xf32>
    %cst_36 = arith.constant 2.500000e-01 : f32
    %121 = vector.broadcast %cst_36 : f32 to vector<64x128xf32>
    %122 = arith.mulf %120, %121 : vector<64x128xf32>
    %c0_37 = arith.constant 0 : index
    %c0_38 = arith.constant 0 : index
    %123 = vector.load %arg6[%c0_37, %c0_38] : memref<1x128xf32, #tpu.memory_space<vmem>>, vector<1x128xf32>
    %124 = vector.broadcast %123 : vector<1x128xf32> to vector<64x128xf32>
    %125 = arith.addf %122, %124 : vector<64x128xf32>
    %cst_39 = arith.constant 0.000000e+00 : f32
    %126 = vector.broadcast %cst_39 : f32 to vector<64x128xf32>
    %127 = arith.maximumf %125, %126 : vector<64x128xf32>
    %128 = arith.truncf %127 : vector<64x128xf32> to vector<64x128xbf16>
    %c0_40 = arith.constant 0 : index
    %c0_41 = arith.constant 0 : index
    %129 = vector.load %arg7[%c0_40, %c0_41] : memref<128x128xbf16, #tpu.memory_space<vmem>>, vector<128x128xbf16>
    %cst_42 = arith.constant dense<0.000000e+00> : vector<64x128xf32>
    %130 = tpu.matmul %128, %129, %cst_42 {dimension_numbers = #tpu.dot_dimension_numbers<[1], [0], [0], [1], [0, 0, 1, 1], [], []>} : vector<64x128xbf16>, vector<128x128xbf16>, vector<64x128xf32> -> vector<64x128xf32>
    %c0_43 = arith.constant 0 : index
    %c0_44 = arith.constant 0 : index
    %131 = vector.load %arg1[%c0_43, %c0_44] : memref<64x128xbf16, #tpu.memory_space<vmem>>, vector<64x128xbf16>
    %c0_45 = arith.constant 0 : index
    %c0_46 = arith.constant 0 : index
    %132 = vector.load %arg8[%c0_45, %c0_46] : memref<128x128xbf16, #tpu.memory_space<vmem>>, vector<128x128xbf16>
    %cst_47 = arith.constant dense<0.000000e+00> : vector<64x128xf32>
    %133 = tpu.matmul %131, %132, %cst_47 {dimension_numbers = #tpu.dot_dimension_numbers<[1], [0], [0], [1], [0, 0, 1, 1], [], []>} : vector<64x128xbf16>, vector<128x128xbf16>, vector<64x128xf32> -> vector<64x128xf32>
    %134 = arith.addf %130, %133 : vector<64x128xf32>
    %c0_48 = arith.constant 0 : index
    %c0_49 = arith.constant 0 : index
    %135 = vector.load %arg9[%c0_48, %c0_49] : memref<1x128xf32, #tpu.memory_space<vmem>>, vector<1x128xf32>
    %136 = vector.broadcast %135 : vector<1x128xf32> to vector<64x128xf32>
    %137 = arith.addf %134, %136 : vector<64x128xf32>
    %138 = arith.truncf %137 : vector<64x128xf32> to vector<64x128xbf16>
    %c0_50 = arith.constant 0 : index
    %c0_51 = arith.constant 0 : index
    %139 = vector.load %arg10[%c0_50, %c0_51] : memref<64x128xbf16, #tpu.memory_space<vmem>>, vector<64x128xbf16>
    tpu.vector_store %arg10[%c0_50, %c0_51], %138 {strides = array<i32>} : memref<64x128xbf16, #tpu.memory_space<vmem>>, vector<64x128xbf16>,
    return
  }
  func.func @transform_0(%arg0: i32) -> (i32, i32) {
    %c0_i32 = arith.constant 0 : i32
    %c0_i32_0 = arith.constant 0 : i32
    return %arg0, %c0_i32 : i32, i32
  }
  func.func @transform_1(%arg0: i32) -> (i32, i32) {
    %c0_i32 = arith.constant 0 : i32
    %c0_i32_0 = arith.constant 0 : i32
    return %arg0, %c0_i32 : i32, i32
  }
  func.func @transform_2(%arg0: i32) -> (i32, i32) {
    %c0_i32 = arith.constant 0 : i32
    %c0_i32_0 = arith.constant 0 : i32
    %c0_i32_1 = arith.constant 0 : i32
    return %c0_i32, %c0_i32_0 : i32, i32
  }
  func.func @transform_3(%arg0: i32) -> (i32, i32) {
    %c0_i32 = arith.constant 0 : i32
    %c0_i32_0 = arith.constant 0 : i32
    %c0_i32_1 = arith.constant 0 : i32
    return %c0_i32, %c0_i32_0 : i32, i32
  }
  func.func @transform_4(%arg0: i32) -> (i32, i32) {
    %c0_i32 = arith.constant 0 : i32
    %c0_i32_0 = arith.constant 0 : i32
    return %arg0, %c0_i32 : i32, i32
  }
  func.func @transform_5(%arg0: i32) -> (i32, i32) {
    %c0_i32 = arith.constant 0 : i32
    %c0_i32_0 = arith.constant 0 : i32
    %c0_i32_1 = arith.constant 0 : i32
    return %c0_i32, %c0_i32_0 : i32, i32
  }
  func.func @transform_6(%arg0: i32) -> (i32, i32) {
    %c0_i32 = arith.constant 0 : i32
    %c0_i32_0 = arith.constant 0 : i32
    %c0_i32_1 = arith.constant 0 : i32
    return %c0_i32, %c0_i32_0 : i32, i32
  }
  func.func @transform_7(%arg0: i32) -> (i32, i32) {
    %c0_i32 = arith.constant 0 : i32
    %c0_i32_0 = arith.constant 0 : i32
    %c0_i32_1 = arith.constant 0 : i32
    return %c0_i32, %c0_i32_0 : i32, i32
  }
  func.func @transform_8(%arg0: i32) -> (i32, i32) {
    %c0_i32 = arith.constant 0 : i32
    %c0_i32_0 = arith.constant 0 : i32
    %c0_i32_1 = arith.constant 0 : i32
    return %c0_i32, %c0_i32_0 : i32, i32
  }
  func.func @transform_9(%arg0: i32) -> (i32, i32) {
    %c0_i32 = arith.constant 0 : i32
    %c0_i32_0 = arith.constant 0 : i32
    return %arg0, %c0_i32 : i32, i32
  }
}

</mosaic_0001>

<llo_original>
// kernel: gnn_forward.2
$region0: #{gnn_forward.2}
  #allocation0 [shape = 'u32[]', space=smem, size = 0x4, offset = 0x4, fixed_abs, tag = 'smem constant byte address 0x4 - core index']
  #allocation1 [shape = 'u32[72,128]{1,0:T(1,128)}', space=vmem, size = 0x9000, scoped, tag = 'internal scratch']
  %s0 = inlined_call_operand.vmem [shape: bf16[128,128], index: 0, kind: input, shape index: {}]
  %s1 = inlined_call_operand.vmem [shape: s8[128,128], index: 1, kind: input, shape index: {}]
  %s2 = inlined_call_operand.vmem [shape: bf16[512,128], index: 2, kind: input, shape index: {}]
  %s3 = inlined_call_operand.vmem [shape: f32[4,128], index: 3, kind: input, shape index: {}]
  %s4 = inlined_call_operand.vmem [shape: f32[128,4], index: 4, kind: input, shape index: {}]
  %s5 = inlined_call_operand.vmem [shape: f32[1,128], index: 5, kind: input, shape index: {}]
  %s6 = inlined_call_operand.vmem [shape: bf16[128,128], index: 6, kind: input, shape index: {}]
  %s7 = inlined_call_operand.vmem [shape: bf16[128,128], index: 7, kind: input, shape index: {}]
  %s8 = inlined_call_operand.vmem [shape: f32[1,128], index: 8, kind: input, shape index: {}]
  %s9 = inlined_call_operand.vmem [shape: bf16[128,128], index: 9, kind: output, shape index: {}]
  %s10 = sld [smem:[#allocation0]]
  $region69: #{gnn_forward.2} parent=0
    _
  %s12 = ssub.s32 1, %s10
  %s13 = scalar_select 0, %s12, %s10
  loop: start=0, step=1, limit=4
  $region2: #{gnn_forward.2} parent=0 // loop_pre_header
    _
  $region3: #{gnn_forward.2} parent=0 // loop_header
    %s15 = sphi 0, %s19
    %p16 = scmp.ge.s32.totalorder %s15, 4
    %s25 = sphi 0, %s27
    %s28 = sphi 0, %s25
    %s29 = sphi 0, %s28
    %s45 = sphi 0, %s29
    %s51 = sphi 0, %s53
    %s54 = sphi 0, %s51
    %s55 = sphi 0, %s54
    %s71 = sphi 0, %s55
    %s75 = sphi 0, %s75
    %s77 = sphi 0, %s75
    %s78 = sphi 0, %s77
    %s92 = sphi 0, %s78
    %s96 = sphi 0, %s96
    %s98 = sphi 0, %s96
    %s99 = sphi 0, %s98
    %s113 = sphi 0, %s99
    %s119 = sphi 0, %s121
    %s122 = sphi 0, %s119
    %s123 = sphi 0, %s122
    %s139 = sphi 0, %s123
    %s143 = sphi 0, %s143
    %s145 = sphi 0, %s143
    %s146 = sphi 0, %s145
    %s160 = sphi 0, %s146
    %s164 = sphi 0, %s164
    %s166 = sphi 0, %s164
    %s167 = sphi 0, %s166
    %s181 = sphi 0, %s167
    %s185 = sphi 0, %s185
    %s187 = sphi 0, %s185
    %s188 = sphi 0, %s187
    %s202 = sphi 0, %s188
    %s206 = sphi 0, %s206
    %s208 = sphi 0, %s206
    %s209 = sphi 0, %s208
    %s223 = sphi 0, %s209
    %s229 = sphi 0, %s231
    %s232 = sphi 0, %s229
    %s233 = sphi 0, %s232
    %s249 = sphi 0, %s233
  $region4: #{gnn_forward.2} parent=0 // loop_header_branch
    %18 = sbr.rel (%p16) target = $region8
  $region5: #{gnn_forward.2} parent=0 // loop_body
    %s20 = ssub.s32 %s15, 1
    %s21 = ssub.s32 %s15, 2
    %s22 = sadd.s32 %s15, 1
    %s23 = ssub.s32 %s15, %s22
    %p24 = scmp.eq.s32.totalorder %s23, 0
    %s26 = sadd.s32 %s25, 1
    %s27 = scalar_select %p24, %s25, %s26
    %p30 = pneg %p24
    %p31 = scmp.eq.s32.totalorder %s15, 1
    %p32 = por %p30, %p31
    %p33 = scmp.ne.s32.totalorder %s25, %s28
    %p34 = scmp.eq.s32.totalorder %s15, 0
    %p35 = por %p33, %p34
    %p36 = scmp.ne.s32.totalorder %s25, %s28
    %p37 = scmp.eq.s32.totalorder %s20, 1
    %p38 = por %p36, %p37
    %p39 = scmp.ne.s32.totalorder %s28, %s29
    %p40 = scmp.eq.s32.totalorder %s20, 0
    %p41 = por %p39, %p40
    %p42 = scmp.ne.s32.totalorder %s28, %s29
    %p43 = scmp.eq.s32.totalorder %s21, 1
    %p44 = por %p42, %p43
    %p46 = scmp.ne.s32.totalorder %s29, %s45
    %p47 = scmp.eq.s32.totalorder %s21, 0
    %p48 = por %p46, %p47
    %s49 = ssub.s32 %s15, %s22
    %p50 = scmp.eq.s32.totalorder %s49, 0
    %s52 = sadd.s32 %s51, 1
    %s53 = scalar_select %p50, %s51, %s52
    %p56 = pneg %p50
    %p57 = scmp.eq.s32.totalorder %s15, 1
    %p58 = por %p56, %p57
    %p59 = scmp.ne.s32.totalorder %s51, %s54
    %p60 = scmp.eq.s32.totalorder %s15, 0
    %p61 = por %p59, %p60
    %p62 = scmp.ne.s32.totalorder %s51, %s54
    %p63 = scmp.eq.s32.totalorder %s20, 1
    %p64 = por %p62, %p63
    %p65 = scmp.ne.s32.totalorder %s54, %s55
    %p66 = scmp.eq.s32.totalorder %s20, 0
    %p67 = por %p65, %p66
    %p68 = scmp.ne.s32.totalorder %s54, %s55
    %p69 = scmp.eq.s32.totalorder %s21, 1
    %p70 = por %p68, %p69
    %p72 = scmp.ne.s32.totalorder %s55, %s71
    %p73 = scmp.eq.s32.totalorder %s21, 0
    %p74 = por %p72, %p73
    %s76 = sadd.s32 %s75, 1
    %p79 = scmp.eq.s32.totalorder %s15, 1
    %p80 = scmp.ne.s32.totalorder %s75, %s77
    %p81 = scmp.eq.s32.totalorder %s15, 0
    %p82 = por %p80, %p81
    %p83 = scmp.ne.s32.totalorder %s75, %s77
    %p84 = scmp.eq.s32.totalorder %s20, 1
    %p85 = por %p83, %p84
    %p86 = scmp.ne.s32.totalorder %s77, %s78
    %p87 = scmp.eq.s32.totalorder %s20, 0
    %p88 = por %p86, %p87
    %p89 = scmp.ne.s32.totalorder %s77, %s78
    %p90 = scmp.eq.s32.totalorder %s21, 1
    %p91 = por %p89, %p90
    %p93 = scmp.ne.s32.totalorder %s78, %s92
    %p94 = scmp.eq.s32.totalorder %s21, 0
    %p95 = por %p93, %p94
    %s97 = sadd.s32 %s96, 1
    %p100 = scmp.eq.s32.totalorder %s15, 1
    %p101 = scmp.ne.s32.totalorder %s96, %s98
    %p102 = scmp.eq.s32.totalorder %s15, 0
    %p103 = por %p101, %p102
    %p104 = scmp.ne.s32.totalorder %s96, %s98
    %p105 = scmp.eq.s32.totalorder %s20, 1
    %p106 = por %p104, %p105
    %p107 = scmp.ne.s32.totalorder %s98, %s99
    %p108 = scmp.eq.s32.totalorder %s20, 0
    %p109 = por %p107, %p108
    %p110 = scmp.ne.s32.totalorder %s98, %s99
    %p111 = scmp.eq.s32.totalorder %s21, 1
    %p112 = por %p110, %p111
    %p114 = scmp.ne.s32.totalorder %s99, %s113
    %p115 = scmp.eq.s32.totalorder %s21, 0
    %p116 = por %p114, %p115
    %s117 = ssub.s32 %s15, %s22
    %p118 = scmp.eq.s32.totalorder %s117, 0
    %s120 = sadd.s32 %s119, 1
    %s121 = scalar_select %p118, %s119, %s120
    %p124 = pneg %p118
    %p125 = scmp.eq.s32.totalorder %s15, 1
    %p126 = por %p124, %p125
    %p127 = scmp.ne.s32.totalorder %s119, %s122
    %p128 = scmp.eq.s32.totalorder %s15, 0
    %p129 = por %p127, %p128
    %p130 = scmp.ne.s32.totalorder %s119, %s122
    %p131 = scmp.eq.s32.totalorder %s20, 1
    %p132 = por %p130, %p131
    %p133 = scmp.ne.s32.totalorder %s122, %s123
    %p134 = scmp.eq.s32.totalorder %s20, 0
    %p135 = por %p133, %p134
    %p136 = scmp.ne.s32.totalorder %s122, %s123
    %p137 = scmp.eq.s32.totalorder %s21, 1
    %p138 = por %p136, %p137
    %p140 = scmp.ne.s32.totalorder %s123, %s139
    %p141 = scmp.eq.s32.totalorder %s21, 0
    %p142 = por %p140, %p141
    %s144 = sadd.s32 %s143, 1
    %p147 = scmp.eq.s32.totalorder %s15, 1
    %p148 = scmp.ne.s32.totalorder %s143, %s145
    %p149 = scmp.eq.s32.totalorder %s15, 0
    %p150 = por %p148, %p149
    %p151 = scmp.ne.s32.totalorder %s143, %s145
    %p152 = scmp.eq.s32.totalorder %s20, 1
    %p153 = por %p151, %p152
    %p154 = scmp.ne.s32.totalorder %s145, %s146
    %p155 = scmp.eq.s32.totalorder %s20, 0
    %p156 = por %p154, %p155
    %p157 = scmp.ne.s32.totalorder %s145, %s146
    %p158 = scmp.eq.s32.totalorder %s21, 1
    %p159 = por %p157, %p158
    %p161 = scmp.ne.s32.totalorder %s146, %s160
    %p162 = scmp.eq.s32.totalorder %s21, 0
    %p163 = por %p161, %p162
    %s165 = sadd.s32 %s164, 1
    %p168 = scmp.eq.s32.totalorder %s15, 1
    %p169 = scmp.ne.s32.totalorder %s164, %s166
    %p170 = scmp.eq.s32.totalorder %s15, 0
    %p171 = por %p169, %p170
    %p172 = scmp.ne.s32.totalorder %s164, %s166
    %p173 = scmp.eq.s32.totalorder %s20, 1
    %p174 = por %p172, %p173
    %p175 = scmp.ne.s32.totalorder %s166, %s167
    %p176 = scmp.eq.s32.totalorder %s20, 0
    %p177 = por %p175, %p176
    %p178 = scmp.ne.s32.totalorder %s166, %s167
    %p179 = scmp.eq.s32.totalorder %s21, 1
    %p180 = por %p178, %p179
    %p182 = scmp.ne.s32.totalorder %s167, %s181
    %p183 = scmp.eq.s32.totalorder %s21, 0
    %p184 = por %p182, %p183
    %s186 = sadd.s32 %s185, 1
    %p189 = scmp.eq.s32.totalorder %s15, 1
    %p190 = scmp.ne.s32.totalorder %s185, %s187
    %p191 = scmp.eq.s32.totalorder %s15, 0
    %p192 = por %p190, %p191
    %p193 = scmp.ne.s32.totalorder %s185, %s187
    %p194 = scmp.eq.s32.totalorder %s20, 1
    %p195 = por %p193, %p194
    %p196 = scmp.ne.s32.totalorder %s187, %s188
    %p197 = scmp.eq.s32.totalorder %s20, 0
    %p198 = por %p196, %p197
    %p199 = scmp.ne.s32.totalorder %s187, %s188
    %p200 = scmp.eq.s32.totalorder %s21, 1
    %p201 = por %p199, %p200
    %p203 = scmp.ne.s32.totalorder %s188, %s202
    %p204 = scmp.eq.s32.totalorder %s21, 0
    %p205 = por %p203, %p204
    %s207 = sadd.s32 %s206, 1
    %p210 = scmp.eq.s32.totalorder %s15, 1
    %p211 = scmp.ne.s32.totalorder %s206, %s208
    %p212 = scmp.eq.s32.totalorder %s15, 0
    %p213 = por %p211, %p212
    %p214 = scmp.ne.s32.totalorder %s206, %s208
    %p215 = scmp.eq.s32.totalorder %s20, 1
    %p216 = por %p214, %p215
    %p217 = scmp.ne.s32.totalorder %s208, %s209
    %p218 = scmp.eq.s32.totalorder %s20, 0
    %p219 = por %p217, %p218
    %p220 = scmp.ne.s32.totalorder %s208, %s209
    %p221 = scmp.eq.s32.totalorder %s21, 1
    %p222 = por %p220, %p221
    %p224 = scmp.ne.s32.totalorder %s209, %s223
    %p225 = scmp.eq.s32.totalorder %s21, 0
    %p226 = por %p224, %p225
    %s227 = ssub.s32 %s15, %s22
    %p228 = scmp.eq.s32.totalorder %s227, 0
    %s230 = sadd.s32 %s229, 1
    %s231 = scalar_select %p228, %s229, %s230
    %p234 = pneg %p228
    %p235 = scmp.eq.s32.totalorder %s15, 1
    %p236 = por %p234, %p235
    %p237 = scmp.ne.s32.totalorder %s229, %s232
    %p238 = scmp.eq.s32.totalorder %s15, 0
    %p239 = por %p237, %p238
    %p240 = scmp.ne.s32.totalorder %s229, %s232
    %p241 = scmp.eq.s32.totalorder %s20, 1
    %p242 = por %p240, %p241
    %p243 = scmp.ne.s32.totalorder %s232, %s233
    %p244 = scmp.eq.s32.totalorder %s20, 0
    %p245 = por %p243, %p244
    %p246 = scmp.ne.s32.totalorder %s232, %s233
    %p247 = scmp.eq.s32.totalorder %s21, 1
    %p248 = por %p246, %p247
    %p250 = scmp.ne.s32.totalorder %s233, %s249
    %p251 = scmp.eq.s32.totalorder %s21, 0
    %p252 = por %p250, %p251
    %p253 = scmp.le.s32.totalorder 1, %s15
    %p254 = scmp.lt.s32.totalorder %s15, 3
    %p255 = pnand %p253, %p254
    %p256 = pneg %p255
    // Predicated region
    $region9: #{gnn_forward.2} parent=5 // pred_check
      _
    $region10: #{gnn_forward.2} parent=5 // pred_check_branch
      %258 = sbr.rel (%p255) target = $region12
    $region11: #{gnn_forward.2} parent=5 // pred_region
      %s259 = ssub.s32 %s15, 1
      // Predicated region
      $region13: #{gnn_forward.2} parent=11 // pred_check
        %p260 = pneg %p88
      $region14: #{gnn_forward.2} parent=11 // pred_check_branch
        %262 = sbr.rel (%p260) target = $region16
      $region15: #{gnn_forward.2} parent=11 // pred_region
        _
      $region16: #{gnn_forward.2} parent=11 // pred_fallthru
        _
      // Predicated region
      $region17: #{gnn_forward.2} parent=11 // pred_check
        %p263 = pneg %p109
      $region18: #{gnn_forward.2} parent=11 // pred_check_branch
        %265 = sbr.rel (%p263) target = $region20
      $region19: #{gnn_forward.2} parent=11 // pred_region
        _
      $region20: #{gnn_forward.2} parent=11 // pred_fallthru
        _
      // Predicated region
      $region21: #{gnn_forward.2} parent=11 // pred_check
        %p266 = pneg %p156
      $region22: #{gnn_forward.2} parent=11 // pred_check_branch
        %268 = sbr.rel (%p266) target = $region24
      $region23: #{gnn_forward.2} parent=11 // pred_region
        _
      $region24: #{gnn_forward.2} parent=11 // pred_fallthru
        _
      // Predicated region
      $region25: #{gnn_forward.2} parent=11 // pred_check
        %p269 = pneg %p177
      $region26: #{gnn_forward.2} parent=11 // pred_check_branch
        %271 = sbr.rel (%p269) target = $region28
      $region27: #{gnn_forward.2} parent=11 // pred_region
        _
      $region28: #{gnn_forward.2} parent=11 // pred_fallthru
        _
      // Predicated region
      $region29: #{gnn_forward.2} parent=11 // pred_check
        %p272 = pneg %p198
      $region30: #{gnn_forward.2} parent=11 // pred_check_branch
        %274 = sbr.rel (%p272) target = $region32
      $region31: #{gnn_forward.2} parent=11 // pred_region
        _
      $region32: #{gnn_forward.2} parent=11 // pred_fallthru
        _
      // Predicated region
      $region33: #{gnn_forward.2} parent=11 // pred_check
        %p275 = pneg %p219
      $region34: #{gnn_forward.2} parent=11 // pred_check_branch
        %277 = sbr.rel (%p275) target = $region36
      $region35: #{gnn_forward.2} parent=11 // pred_region
        _
      $region36: #{gnn_forward.2} parent=11 // pred_fallthru
        _
    $region12: #{gnn_forward.2} parent=5 // pred_fallthru
      _
    %p278 = scmp.lt.s32.totalorder %s15, 2
    // Predicated region
    $region37: #{gnn_forward.2} parent=5 // pred_check
      %p279 = pneg %p278
    $region38: #{gnn_forward.2} parent=5 // pred_check_branch
      %281 = sbr.rel (%p279) target = $region40
    $region39: #{gnn_forward.2} parent=5 // pred_region
      // Predicated region
      $region41: #{gnn_forward.2} parent=39 // pred_check
        %p282 = pneg %p35
      $region42: #{gnn_forward.2} parent=39 // pred_check_branch
        %284 = sbr.rel (%p282) target = $region44
      $region43: #{gnn_forward.2} parent=39 // pred_region
        %s285 = smul.u32 8, %s15
        %p286 = scmp.lt.s32.totalorder %s285, 15
        %s287 = scalar_select %p286, %s285, 15
        %s288 = smul.addr %s287, 4
        %s289 = scalar_lea.vmem %s0, %s288
        %s290 = smul.u32 8, %s15
      $region44: #{gnn_forward.2} parent=39 // pred_fallthru
        _
      // Predicated region
      $region45: #{gnn_forward.2} parent=39 // pred_check
        %p291 = pneg %p61
      $region46: #{gnn_forward.2} parent=39 // pred_check_branch
        %293 = sbr.rel (%p291) target = $region48
      $region47: #{gnn_forward.2} parent=39 // pred_region
        %s294 = smul.u32 2, %s15
        %p295 = scmp.lt.s32.totalorder %s294, 3
        %s296 = scalar_select %p295, %s294, 3
        %s297 = smul.addr %s296, 8
        %s298 = scalar_lea.vmem %s1, %s297
        %s299 = smul.u32 2, %s15
      $region48: #{gnn_forward.2} parent=39 // pred_fallthru
        _
      // Predicated region
      $region49: #{gnn_forward.2} parent=39 // pred_check
        %p300 = pneg %p129
      $region50: #{gnn_forward.2} parent=39 // pred_check_branch
        %302 = sbr.rel (%p300) target = $region52
      $region51: #{gnn_forward.2} parent=39 // pred_region
        %s303 = smul.u32 8, %s15
        %p304 = scmp.lt.s32.totalorder %s303, 15
        %s305 = scalar_select %p304, %s303, 15
        %s306 = smul.addr %s305, 8
        %s307 = scalar_lea.vmem %s4, %s306
        %s308 = smul.u32 8, %s15
      $region52: #{gnn_forward.2} parent=39 // pred_fallthru
        _
    $region40: #{gnn_forward.2} parent=5 // pred_fallthru
      _
    %p309 = scmp.le.s32.totalorder 1, %s15
    %p310 = scmp.lt.s32.totalorder %s15, 3
    %p311 = pnand %p309, %p310
    %p312 = pneg %p311
    // Predicated region
    $region53: #{gnn_forward.2} parent=5 // pred_check
      _
    $region54: #{gnn_forward.2} parent=5 // pred_check_branch
      %314 = sbr.rel (%p311) target = $region56
    $region55: #{gnn_forward.2} parent=5 // pred_region
      %s315 = ssub.s32 %s15, 1
      %s316 = smul.u32 8, %s20
      %p317 = scmp.lt.s32.totalorder %s316, 15
      %s318 = scalar_select %p317, %s316, 15
      %s319 = smul.addr %s318, 4
      %s320 = scalar_lea.vmem %s0, %s319
      %p321 = pneg %p41
      %p322 = pneg %p38
      %s323 = smul.u32 2, %s20
      %p324 = scmp.lt.s32.totalorder %s323, 3
      %s325 = scalar_select %p324, %s323, 3
      %s326 = smul.addr %s325, 8
      %s327 = scalar_lea.vmem %s1, %s326
      %p328 = pneg %p67
      %p329 = pneg %p64
      %p330 = pneg %p88
      %p331 = pneg %p85
      %p332 = pneg %p109
      %p333 = pneg %p106
      %s334 = smul.u32 8, %s20
      %p335 = scmp.lt.s32.totalorder %s334, 15
      %s336 = scalar_select %p335, %s334, 15
      %s337 = smul.addr %s336, 8
      %s338 = scalar_lea.vmem %s4, %s337
      %p339 = pneg %p135
      %p340 = pneg %p132
      %p341 = pneg %p156
      %p342 = pneg %p153
      %p343 = pneg %p177
      %p344 = pneg %p174
      %p345 = pneg %p198
      %p346 = pneg %p195
      %p347 = pneg %p219
      %p348 = pneg %p216
      %p349 = pneg %p245
      %p350 = pneg %p242
      %s351 = smul.u32 8, %s20
      %p352 = scmp.lt.s32.totalorder %s351, 15
      %s353 = scalar_select %p352, %s351, 15
      %s354 = smul.addr %s353, 4
      %s355 = scalar_lea.vmem %s9, %s354
      %s356 = smul.u32 8, %s20
      %p357 = scmp.lt.s32.totalorder %s356, 15
      %s358 = scalar_select %p357, %s356, 15
      %s359 = smul.addr %s358, 4
      %s360 = scalar_lea.vmem %s0, %s359
      %s361 = smul.u32 8, %s20
      %s362 = smul.u32 2, %s20
      %p363 = scmp.lt.s32.totalorder %s362, 3
      %s364 = scalar_select %p363, %s362, 3
      %s365 = smul.addr %s364, 8
      %s366 = scalar_lea.vmem %s1, %s365
      %s367 = smul.u32 2, %s20
      %s368 = smul.u32 8, %s20
      %p369 = scmp.lt.s32.totalorder %s368, 15
      %s370 = scalar_select %p369, %s368, 15
      %s371 = smul.addr %s370, 8
      %s372 = scalar_lea.vmem %s4, %s371
      %s373 = smul.u32 8, %s20
      %s374 = smul.u32 8, %s20
      %p375 = scmp.lt.s32.totalorder %s374, 15
      %s376 = scalar_select %p375, %s374, 15
      %s377 = smul.addr %s376, 4
      %s378 = scalar_lea.vmem %s9, %s377
      %s379 = smul.u32 8, %s20
      %v380 = vld [vmem:[%s366] sm:$0xff]
      %v381 = vld [vmem:[%s366 + $0x8] sm:$0xff]
      %v382 = vunpack.c.0.s8 %v380
      %v383 = vunpack.c.1.s8 %v380
      %v384 = vunpack.c.2.s8 %v380
      %v385 = vunpack.c.3.s8 %v380
      %v386 = vunpack.c.0.s8 %v381
      %v387 = vunpack.c.1.s8 %v381
      %v388 = vunpack.c.2.s8 %v381
      %v389 = vunpack.c.3.s8 %v381
      %v390 = vcvt.s32.f32 %v382
      %v391 = vcvt.s32.f32 %v383
      %v392 = vcvt.s32.f32 %v384
      %v393 = vcvt.s32.f32 %v385
      %v394 = vcvt.s32.f32 %v386
      %v395 = vcvt.s32.f32 %v387
      %v396 = vcvt.s32.f32 %v388
      %v397 = vcvt.s32.f32 %v389
      %v398 = vsub.f32 %v390, 1.0
      %v399 = vsub.f32 %v391, 1.0
      %v400 = vsub.f32 %v392, 1.0
      %v401 = vsub.f32 %v393, 1.0
      %v402 = vsub.f32 %v394, 1.0
      %v403 = vsub.f32 %v395, 1.0
      %v404 = vsub.f32 %v396, 1.0
      %v405 = vsub.f32 %v397, 1.0
      %v406 = vmul.f32 %v398, 1e+30
      %v407 = vmul.f32 %v399, 1e+30
      %v408 = vmul.f32 %v400, 1e+30
      %v409 = vmul.f32 %v401, 1e+30
      %v410 = vmul.f32 %v402, 1e+30
      %v411 = vmul.f32 %v403, 1e+30
      %v412 = vmul.f32 %v404, 1e+30
      %v413 = vmul.f32 %v405, 1e+30
      %v414 = vld [vmem:[%s372] sm:$0xff]
      %v415 = vld [vmem:[%s372 + $0x8] sm:$0xff]
      %v416 = vld [vmem:[%s372 + $0x10] sm:$0xff]
      %v417 = vld [vmem:[%s372 + $0x18] sm:$0xff]
      %v418 = vld [vmem:[%s372 + $0x20] sm:$0xff]
      %v419 = vld [vmem:[%s372 + $0x28] sm:$0xff]
      %v420 = vld [vmem:[%s372 + $0x30] sm:$0xff]
      %v421 = vld [vmem:[%s372 + $0x38] sm:$0xff]
      %v422 = vld [vmem:[%s3] sm:$0xf]
      %424 = vset.pattern.permute.xlu0 0
      %425 = vperm.xlu0 %424, %v414
      %v426 = vpop.permute.xlu0 %425
      %429 = vset.pattern.permute.xlu0 0
      %430 = vperm.xlu0 %429, %v415
      %v431 = vpop.permute.xlu0 %430
      %434 = vset.pattern.permute.xlu0 0
      %435 = vperm.xlu0 %434, %v416
      %v436 = vpop.permute.xlu0 %435
      %439 = vset.pattern.permute.xlu0 0
      %440 = vperm.xlu0 %439, %v417
      %v441 = vpop.permute.xlu0 %440
      %444 = vset.pattern.permute.xlu0 0
      %445 = vperm.xlu0 %444, %v418
      %v446 = vpop.permute.xlu0 %445
      %449 = vset.pattern.permute.xlu0 0
      %450 = vperm.xlu0 %449, %v419
      %v451 = vpop.permute.xlu0 %450
      %454 = vset.pattern.permute.xlu0 0
      %455 = vperm.xlu0 %454, %v420
      %v456 = vpop.permute.xlu0 %455
      %459 = vset.pattern.permute.xlu0 0
      %460 = vperm.xlu0 %459, %v421
      %v461 = vpop.permute.xlu0 %460
      %v463 = vperm.slane %v422, 0
      %v464 = vadd.f32 %v426, %v463
      %v465 = vadd.f32 %v431, %v463
      %v466 = vadd.f32 %v436, %v463
      %v467 = vadd.f32 %v441, %v463
      %v468 = vadd.f32 %v446, %v463
      %v469 = vadd.f32 %v451, %v463
      %v470 = vadd.f32 %v456, %v463
      %v471 = vadd.f32 %v461, %v463
      %v472 = vmul.f32 %v464, 0.2
      %v473 = vmul.f32 %v465, 0.2
      %v474 = vmul.f32 %v466, 0.2
      %v475 = vmul.f32 %v467, 0.2
      %v476 = vmul.f32 %v468, 0.2
      %v477 = vmul.f32 %v469, 0.2
      %v478 = vmul.f32 %v470, 0.2
      %v479 = vmul.f32 %v471, 0.2
      %v480 = vmax.f32 %v464, %v472
      %v481 = vmax.f32 %v465, %v473
      %v482 = vmax.f32 %v466, %v474
      %v483 = vmax.f32 %v467, %v475
      %v484 = vmax.f32 %v468, %v476
      %v485 = vmax.f32 %v469, %v477
      %v486 = vmax.f32 %v470, %v478
      %v487 = vmax.f32 %v471, %v479
      %v488 = vadd.f32 %v480, %v406
      %v489 = vadd.f32 %v481, %v407
      %v490 = vadd.f32 %v482, %v408
      %v491 = vadd.f32 %v483, %v409
      %v492 = vadd.f32 %v484, %v410
      %v493 = vadd.f32 %v485, %v411
      %v494 = vadd.f32 %v486, %v412
      %v495 = vadd.f32 %v487, %v413
      %496 = vmax.xlane.f32.xlu0 %v488
      %v497 = vpop.xlane.xlu0 %496
      %498 = vmax.xlane.f32.xlu0 %v489
      %v499 = vpop.xlane.xlu0 %498
      %500 = vmax.xlane.f32.xlu0 %v490
      %v501 = vpop.xlane.xlu0 %500
      %502 = vmax.xlane.f32.xlu0 %v491
      %v503 = vpop.xlane.xlu0 %502
      %504 = vmax.xlane.f32.xlu0 %v492
      %v505 = vpop.xlane.xlu0 %504
      %506 = vmax.xlane.f32.xlu0 %v493
      %v507 = vpop.xlane.xlu0 %506
      %508 = vmax.xlane.f32.xlu0 %v494
      %v509 = vpop.xlane.xlu0 %508
      %510 = vmax.xlane.f32.xlu0 %v495
      %v511 = vpop.xlane.xlu0 %510
      %v512 = vsub.f32 %v488, %v497
      %v513 = vsub.f32 %v489, %v499
      %v514 = vsub.f32 %v490, %v501
      %v515 = vsub.f32 %v491, %v503
      %v516 = vsub.f32 %v492, %v505
      %v517 = vsub.f32 %v493, %v507
      %v518 = vsub.f32 %v494, %v509
      %v519 = vsub.f32 %v495, %v511
      %v520 = vmul.f32 %v512, 1.442695
      %v521 = vpow.pop %v520
      %v522 = vmul.f32 %v513, 1.442695
      %v523 = vpow.pop %v522
      %v524 = vmul.f32 %v514, 1.442695
      %v525 = vpow.pop %v524
      %v526 = vmul.f32 %v515, 1.442695
      %v527 = vpow.pop %v526
      %v528 = vmul.f32 %v516, 1.442695
      %v529 = vpow.pop %v528
      %v530 = vmul.f32 %v517, 1.442695
      %v531 = vpow.pop %v530
      %v532 = vmul.f32 %v518, 1.442695
      %v533 = vpow.pop %v532
      %v534 = vmul.f32 %v519, 1.442695
      %v535 = vpow.pop %v534
      %v536 = vmul.f32 %v521, %v390
      %v537 = vmul.f32 %v523, %v391
      %v538 = vmul.f32 %v525, %v392
      %v539 = vmul.f32 %v527, %v393
      %v540 = vmul.f32 %v529, %v394
      %v541 = vmul.f32 %v531, %v395
      %v542 = vmul.f32 %v533, %v396
      %v543 = vmul.f32 %v535, %v397
      %544 = vadd.xlane.f32.xlu0 %v536
      %v545 = vpop.xlane.xlu0 %544
      %546 = vadd.xlane.f32.xlu0 %v537
      %v547 = vpop.xlane.xlu0 %546
      %548 = vadd.xlane.f32.xlu0 %v538
      %v549 = vpop.xlane.xlu0 %548
      %550 = vadd.xlane.f32.xlu0 %v539
      %v551 = vpop.xlane.xlu0 %550
      %552 = vadd.xlane.f32.xlu0 %v540
      %v553 = vpop.xlane.xlu0 %552
      %554 = vadd.xlane.f32.xlu0 %v541
      %v555 = vpop.xlane.xlu0 %554
      %556 = vadd.xlane.f32.xlu0 %v542
      %v557 = vpop.xlane.xlu0 %556
      %558 = vadd.xlane.f32.xlu0 %v543
      %v559 = vpop.xlane.xlu0 %558
      %vm560 = vcmp.gt.f32.partialorder %v545, 0.0
      %vm561 = vcmp.gt.f32.partialorder %v547, 0.0
      %vm562 = vcmp.gt.f32.partialorder %v549, 0.0
      %vm563 = vcmp.gt.f32.partialorder %v551, 0.0
      %vm564 = vcmp.gt.f32.partialorder %v553, 0.0
      %vm565 = vcmp.gt.f32.partialorder %v555, 0.0
      %vm566 = vcmp.gt.f32.partialorder %v557, 0.0
      %vm567 = vcmp.gt.f32.partialorder %v559, 0.0
      %v568 = vsel %vm560, %v545, 1.0
      %v569 = vsel %vm561, %v547, 1.0
      %v570 = vsel %vm562, %v549, 1.0
      %v571 = vsel %vm563, %v551, 1.0
      %v572 = vsel %vm564, %v553, 1.0
      %v573 = vsel %vm565, %v555, 1.0
      %v574 = vsel %vm566, %v557, 1.0
      %v575 = vsel %vm567, %v559, 1.0
      %v576 = vrcp.pop %v568
      %v577 = vrcp.pop %v569
      %v578 = vrcp.pop %v570
      %v579 = vrcp.pop %v571
      %v580 = vrcp.pop %v572
      %v581 = vrcp.pop %v573
      %v582 = vrcp.pop %v574
      %v583 = vrcp.pop %v575
      %v584 = vmul.f32 %v536, %v576
      %v585 = vmul.f32 %v537, %v577
      %v586 = vmul.f32 %v538, %v578
      %v587 = vmul.f32 %v539, %v579
      %v588 = vmul.f32 %v540, %v580
      %v589 = vmul.f32 %v541, %v581
      %v590 = vmul.f32 %v542, %v582
      %v591 = vmul.f32 %v543, %v583
      %v592 = vpack.c.bf16 %v585, %v584
      %v593 = vpack.c.bf16 %v587, %v586
      %v594 = vpack.c.bf16 %v589, %v588
      %v595 = vpack.c.bf16 %v591, %v590
      %v596 = vld [vmem:[%s2] sm:$0xf]
      %v597 = vld [vmem:[%s2 + $0x4] sm:$0xf]
      %v598 = vld [vmem:[%s2 + $0x8] sm:$0xf]
      %v599 = vld [vmem:[%s2 + $0xc] sm:$0xf]
      %v600 = vld [vmem:[%s2 + $0x10] sm:$0xf]
      %v601 = vld [vmem:[%s2 + $0x14] sm:$0xf]
      %v602 = vld [vmem:[%s2 + $0x18] sm:$0xf]
      %v603 = vld [vmem:[%s2 + $0x1c] sm:$0xf]
      %v604 = vld [vmem:[%s2 + $0x20] sm:$0xf]
      %v605 = vld [vmem:[%s2 + $0x24] sm:$0xf]
      %v606 = vld [vmem:[%s2 + $0x28] sm:$0xf]
      %v607 = vld [vmem:[%s2 + $0x2c] sm:$0xf]
      %v608 = vld [vmem:[%s2 + $0x30] sm:$0xf]
      %v609 = vld [vmem:[%s2 + $0x34] sm:$0xf]
      %v610 = vld [vmem:[%s2 + $0x38] sm:$0xf]
      %v611 = vld [vmem:[%s2 + $0x3c] sm:$0xf]
      %612 = vset.pattern.permute.xlu0 1
      %613 = vperm.xlu0 %612, %v414
      %v614 = vpop.permute.xlu0 %613
      %616 = vset.pattern.permute.xlu0 1
      %617 = vperm.xlu0 %616, %v415
      %v618 = vpop.permute.xlu0 %617
      %620 = vset.pattern.permute.xlu0 1
      %621 = vperm.xlu0 %620, %v416
      %v622 = vpop.permute.xlu0 %621
      %624 = vset.pattern.permute.xlu0 1
      %625 = vperm.xlu0 %624, %v417
      %v626 = vpop.permute.xlu0 %625
      %628 = vset.pattern.permute.xlu0 1
      %629 = vperm.xlu0 %628, %v418
      %v630 = vpop.permute.xlu0 %629
      %632 = vset.pattern.permute.xlu0 1
      %633 = vperm.xlu0 %632, %v419
      %v634 = vpop.permute.xlu0 %633
      %636 = vset.pattern.permute.xlu0 1
      %637 = vperm.xlu0 %636, %v420
      %v638 = vpop.permute.xlu0 %637
      %640 = vset.pattern.permute.xlu0 1
      %641 = vperm.xlu0 %640, %v421
      %v642 = vpop.permute.xlu0 %641
      %v644 = vperm.slane %v422, 1
      %v645 = vadd.f32 %v614, %v644
      %v646 = vadd.f32 %v618, %v644
      %v647 = vadd.f32 %v622, %v644
      %v648 = vadd.f32 %v626, %v644
      %v649 = vadd.f32 %v630, %v644
      %v650 = vadd.f32 %v634, %v644
      %v651 = vadd.f32 %v638, %v644
      %v652 = vadd.f32 %v642, %v644
      %v653 = vmul.f32 %v645, 0.2
      %v654 = vmul.f32 %v646, 0.2
      %v655 = vmul.f32 %v647, 0.2
      %v656 = vmul.f32 %v648, 0.2
      %v657 = vmul.f32 %v649, 0.2
      %v658 = vmul.f32 %v650, 0.2
      %v659 = vmul.f32 %v651, 0.2
      %v660 = vmul.f32 %v652, 0.2
      %v661 = vmax.f32 %v645, %v653
      %v662 = vmax.f32 %v646, %v654
      %v663 = vmax.f32 %v647, %v655
      %v664 = vmax.f32 %v648, %v656
      %v665 = vmax.f32 %v649, %v657
      %v666 = vmax.f32 %v650, %v658
      %v667 = vmax.f32 %v651, %v659
      %v668 = vmax.f32 %v652, %v660
      %v669 = vadd.f32 %v661, %v406
      %v670 = vadd.f32 %v662, %v407
      %v671 = vadd.f32 %v663, %v408
      %v672 = vadd.f32 %v664, %v409
      %v673 = vadd.f32 %v665, %v410
      %v674 = vadd.f32 %v666, %v411
      %v675 = vadd.f32 %v667, %v412
      %v676 = vadd.f32 %v668, %v413
      %677 = vmax.xlane.f32.xlu0 %v669
      %v678 = vpop.xlane.xlu0 %677
      %679 = vmax.xlane.f32.xlu0 %v670
      %v680 = vpop.xlane.xlu0 %679
      %681 = vmax.xlane.f32.xlu0 %v671
      %v682 = vpop.xlane.xlu0 %681
      %683 = vmax.xlane.f32.xlu0 %v672
      %v684 = vpop.xlane.xlu0 %683
      %685 = vmax.xlane.f32.xlu0 %v673
      %v686 = vpop.xlane.xlu0 %685
      %687 = vmax.xlane.f32.xlu0 %v674
      %v688 = vpop.xlane.xlu0 %687
      %689 = vmax.xlane.f32.xlu0 %v675
      %v690 = vpop.xlane.xlu0 %689
      %691 = vmax.xlane.f32.xlu0 %v676
      %v692 = vpop.xlane.xlu0 %691
      %v693 = vsub.f32 %v669, %v678
      %v694 = vsub.f32 %v670, %v680
      %v695 = vsub.f32 %v671, %v682
      %v696 = vsub.f32 %v672, %v684
      %v697 = vsub.f32 %v673, %v686
      %v698 = vsub.f32 %v674, %v688
      %v699 = vsub.f32 %v675, %v690
      %v700 = vsub.f32 %v676, %v692
      %v701 = vmul.f32 %v693, 1.442695
      %v702 = vpow.pop %v701
      %v703 = vmul.f32 %v694, 1.442695
      %v704 = vpow.pop %v703
      %v705 = vmul.f32 %v695, 1.442695
      %v706 = vpow.pop %v705
      %v707 = vmul.f32 %v696, 1.442695
      %v708 = vpow.pop %v707
      %v709 = vmul.f32 %v697, 1.442695
      %v710 = vpow.pop %v709
      %v711 = vmul.f32 %v698, 1.442695
      %v712 = vpow.pop %v711
      %v713 = vmul.f32 %v699, 1.442695
      %v714 = vpow.pop %v713
      %v715 = vmul.f32 %v700, 1.442695
      %v716 = vpow.pop %v715
      %v717 = vmul.f32 %v702, %v390
      %v718 = vmul.f32 %v704, %v391
      %v719 = vmul.f32 %v706, %v392
      %v720 = vmul.f32 %v708, %v393
      %v721 = vmul.f32 %v710, %v394
      %v722 = vmul.f32 %v712, %v395
      %v723 = vmul.f32 %v714, %v396
      %v724 = vmul.f32 %v716, %v397
      %725 = vadd.xlane.f32.xlu0 %v717
      %v726 = vpop.xlane.xlu0 %725
      %727 = vadd.xlane.f32.xlu0 %v718
      %v728 = vpop.xlane.xlu0 %727
      %729 = vadd.xlane.f32.xlu0 %v719
      %v730 = vpop.xlane.xlu0 %729
      %731 = vadd.xlane.f32.xlu0 %v720
      %v732 = vpop.xlane.xlu0 %731
      %733 = vadd.xlane.f32.xlu0 %v721
      %v734 = vpop.xlane.xlu0 %733
      %735 = vadd.xlane.f32.xlu0 %v722
      %v736 = vpop.xlane.xlu0 %735
      %737 = vadd.xlane.f32.xlu0 %v723
      %v738 = vpop.xlane.xlu0 %737
      %739 = vadd.xlane.f32.xlu0 %v724
      %v740 = vpop.xlane.xlu0 %739
      %vm741 = vcmp.gt.f32.partialorder %v726, 0.0
      %vm742 = vcmp.gt.f32.partialorder %v728, 0.0
      %vm743 = vcmp.gt.f32.partialorder %v730, 0.0
      %vm744 = vcmp.gt.f32.partialorder %v732, 0.0
      %vm745 = vcmp.gt.f32.partialorder %v734, 0.0
      %vm746 = vcmp.gt.f32.partialorder %v736, 0.0
      %vm747 = vcmp.gt.f32.partialorder %v738, 0.0
      %vm748 = vcmp.gt.f32.partialorder %v740, 0.0
      %v749 = vsel %vm741, %v726, 1.0
      %v750 = vsel %vm742, %v728, 1.0
      %v751 = vsel %vm743, %v730, 1.0
      %v752 = vsel %vm744, %v732, 1.0
      %v753 = vsel %vm745, %v734, 1.0
      %v754 = vsel %vm746, %v736, 1.0
      %v755 = vsel %vm747, %v738, 1.0
      %v756 = vsel %vm748, %v740, 1.0
      %v757 = vrcp.pop %v749
      %v758 = vrcp.pop %v750
      %v759 = vrcp.pop %v751
      %v760 = vrcp.pop %v752
      %v761 = vrcp.pop %v753
      %v762 = vrcp.pop %v754
      %v763 = vrcp.pop %v755
      %v764 = vrcp.pop %v756
      %v765 = vmul.f32 %v717, %v757
      %v766 = vmul.f32 %v718, %v758
      %v767 = vmul.f32 %v719, %v759
      %v768 = vmul.f32 %v720, %v760
      %v769 = vmul.f32 %v721, %v761
      %v770 = vmul.f32 %v722, %v762
      %v771 = vmul.f32 %v723, %v763
      %v772 = vmul.f32 %v724, %v764
      %v773 = vpack.c.bf16 %v766, %v765
      %v774 = vpack.c.bf16 %v768, %v767
      %v775 = vpack.c.bf16 %v770, %v769
      %v776 = vpack.c.bf16 %v772, %v771
      %v777 = vld [vmem:[%s2 + $0x40] sm:$0xf]
      %v778 = vld [vmem:[%s2 + $0x44] sm:$0xf]
      %v779 = vld [vmem:[%s2 + $0x48] sm:$0xf]
      %v780 = vld [vmem:[%s2 + $0x4c] sm:$0xf]
      %v781 = vld [vmem:[%s2 + $0x50] sm:$0xf]
      %v782 = vld [vmem:[%s2 + $0x54] sm:$0xf]
      %v783 = vld [vmem:[%s2 + $0x58] sm:$0xf]
      %v784 = vld [vmem:[%s2 + $0x5c] sm:$0xf]
      %v785 = vld [vmem:[%s2 + $0x60] sm:$0xf]
      %v786 = vld [vmem:[%s2 + $0x64] sm:$0xf]
      %v787 = vld [vmem:[%s2 + $0x68] sm:$0xf]
      %v788 = vld [vmem:[%s2 + $0x6c] sm:$0xf]
      %v789 = vld [vmem:[%s2 + $0x70] sm:$0xf]
      %v790 = vld [vmem:[%s2 + $0x74] sm:$0xf]
      %v791 = vld [vmem:[%s2 + $0x78] sm:$0xf]
      %v792 = vld [vmem:[%s2 + $0x7c] sm:$0xf]
      %v809 = vunpack.c.l.b16 %v777
      %v810 = vunpack.c.l.b16 %v778
      %v811 = vunpack.c.l.b16 %v779
      %v812 = vunpack.c.l.b16 %v780
      %v813 = vunpack.c.l.b16 %v781
      %v814 = vunpack.c.l.b16 %v782
      %v815 = vunpack.c.l.b16 %v783
      %v816 = vunpack.c.l.b16 %v784
      %v817 = vunpack.c.l.b16 %v785
      %v818 = vunpack.c.l.b16 %v786
      %v819 = vunpack.c.l.b16 %v787
      %v820 = vunpack.c.l.b16 %v788
      %v821 = vunpack.c.l.b16 %v789
      %v822 = vunpack.c.l.b16 %v790
      %v823 = vunpack.c.l.b16 %v791
      %v824 = vunpack.c.l.b16 %v792
      %v825 = vpack.c.b16 %v810, %v809
      %v826 = vpack.c.b16 %v812, %v811
      %v827 = vpack.c.b16 %v814, %v813
      %v828 = vpack.c.b16 %v816, %v815
      %v829 = vpack.c.b16 %v818, %v817
      %v830 = vpack.c.b16 %v820, %v819
      %v831 = vpack.c.b16 %v822, %v821
      %v832 = vpack.c.b16 %v824, %v823
      %841 = vmatpush.bf16.msra.mxu0 %v832
      %842 = vmatpush.bf16.msra.mxu0 %v831
      %843 = vmatpush.bf16.msra.mxu0 %v830
      %844 = vmatpush.bf16.msra.mxu0 %v829
      %845 = vmatpush.bf16.msra.mxu0 %v828
      %846 = vmatpush.bf16.msra.mxu0 %v827
      %847 = vmatpush.bf16.msra.mxu0 %v826
      %848 = vmatpush.bf16.msra.mxu0 %v825
      %849 = vmatmul.bf16.gmra.mxu0 %v773
      %v850 = vpop.f32.mrf.mxu0
      %v851 = vadd.f32 0.0, %v850
      %v852 = vpop.f32.mrf.mxu0
      %v853 = vadd.f32 0.0, %v852
      %854 = vmatmul.bf16.gmra.mxu0 %v774
      %v855 = vpop.f32.mrf.mxu0
      %v856 = vadd.f32 0.0, %v855
      %v857 = vpop.f32.mrf.mxu0
      %v858 = vadd.f32 0.0, %v857
      %859 = vmatmul.bf16.gmra.mxu0 %v775
      %v860 = vpop.f32.mrf.mxu0
      %v861 = vadd.f32 0.0, %v860
      %v862 = vpop.f32.mrf.mxu0
      %v863 = vadd.f32 0.0, %v862
      %864 = vmatmul.bf16.gmra.mxu0 %v776
      %v865 = vpop.f32.mrf.mxu0
      %v866 = vadd.f32 0.0, %v865
      %v867 = vpop.f32.mrf.mxu0
      %v868 = vadd.f32 0.0, %v867
      %869 = vdwg.mxu0
      %v886 = vunpack.c.l.b16 %v596
      %v887 = vunpack.c.l.b16 %v597
      %v888 = vunpack.c.l.b16 %v598
      %v889 = vunpack.c.l.b16 %v599
      %v890 = vunpack.c.l.b16 %v600
      %v891 = vunpack.c.l.b16 %v601
      %v892 = vunpack.c.l.b16 %v602
      %v893 = vunpack.c.l.b16 %v603
      %v894 = vunpack.c.l.b16 %v604
      %v895 = vunpack.c.l.b16 %v605
      %v896 = vunpack.c.l.b16 %v606
      %v897 = vunpack.c.l.b16 %v607
      %v898 = vunpack.c.l.b16 %v608
      %v899 = vunpack.c.l.b16 %v609
      %v900 = vunpack.c.l.b16 %v610
      %v901 = vunpack.c.l.b16 %v611
      %v902 = vpack.c.b16 %v887, %v886
      %v903 = vpack.c.b16 %v889, %v888
      %v904 = vpack.c.b16 %v891, %v890
      %v905 = vpack.c.b16 %v893, %v892
      %v906 = vpack.c.b16 %v895, %v894
      %v907 = vpack.c.b16 %v897, %v896
      %v908 = vpack.c.b16 %v899, %v898
      %v909 = vpack.c.b16 %v901, %v900
      %918 = vmatpush.bf16.msra.mxu0 %v909
      %919 = vmatpush.bf16.msra.mxu0 %v908
      %920 = vmatpush.bf16.msra.mxu0 %v907
      %921 = vmatpush.bf16.msra.mxu0 %v906
      %922 = vmatpush.bf16.msra.mxu0 %v905
      %923 = vmatpush.bf16.msra.mxu0 %v904
      %924 = vmatpush.bf16.msra.mxu0 %v903
      %925 = vmatpush.bf16.msra.mxu0 %v902
      %926 = vmatmul.bf16.gmra.mxu0 %v592
      %v927 = vpop.f32.mrf.mxu0
      %v928 = vadd.f32 %v851, %v927
      %v929 = vpop.f32.mrf.mxu0
      %v930 = vadd.f32 %v853, %v929
      %931 = vmatmul.bf16.gmra.mxu0 %v593
      %v932 = vpop.f32.mrf.mxu0
      %v933 = vadd.f32 %v856, %v932
      %v934 = vpop.f32.mrf.mxu0
      %v935 = vadd.f32 %v858, %v934
      %936 = vmatmul.bf16.gmra.mxu0 %v594
      %v937 = vpop.f32.mrf.mxu0
      %v938 = vadd.f32 %v861, %v937
      %v939 = vpop.f32.mrf.mxu0
      %v940 = vadd.f32 %v863, %v939
      %941 = vmatmul.bf16.gmra.mxu0 %v595
      %v942 = vpop.f32.mrf.mxu0
      %v943 = vadd.f32 %v866, %v942
      %v944 = vpop.f32.mrf.mxu0
      %v945 = vadd.f32 %v868, %v944
      %946 = vdwg.mxu0
      %947 = vset.pattern.permute.xlu0 2
      %948 = vperm.xlu0 %947, %v414
      %v949 = vpop.permute.xlu0 %948
      %951 = vset.pattern.permute.xlu0 2
      %952 = vperm.xlu0 %951, %v415
      %v953 = vpop.permute.xlu0 %952
      %955 = vset.pattern.permute.xlu0 2
      %956 = vperm.xlu0 %955, %v416
      %v957 = vpop.permute.xlu0 %956
      %959 = vset.pattern.permute.xlu0 2
      %960 = vperm.xlu0 %959, %v417
      %v961 = vpop.permute.xlu0 %960
      %963 = vset.pattern.permute.xlu0 2
      %964 = vperm.xlu0 %963, %v418
      %v965 = vpop.permute.xlu0 %964
      %967 = vset.pattern.permute.xlu0 2
      %968 = vperm.xlu0 %967, %v419
      %v969 = vpop.permute.xlu0 %968
      %971 = vset.pattern.permute.xlu0 2
      %972 = vperm.xlu0 %971, %v420
      %v973 = vpop.permute.xlu0 %972
      %975 = vset.pattern.permute.xlu0 2
      %976 = vperm.xlu0 %975, %v421
      %v977 = vpop.permute.xlu0 %976
      %v979 = vperm.slane %v422, 2
      %v980 = vadd.f32 %v949, %v979
      %v981 = vadd.f32 %v953, %v979
      %v982 = vadd.f32 %v957, %v979
      %v983 = vadd.f32 %v961, %v979
      %v984 = vadd.f32 %v965, %v979
      %v985 = vadd.f32 %v969, %v979
      %v986 = vadd.f32 %v973, %v979
      %v987 = vadd.f32 %v977, %v979
      %v988 = vmul.f32 %v980, 0.2
      %v989 = vmul.f32 %v981, 0.2
      %v990 = vmul.f32 %v982, 0.2
      %v991 = vmul.f32 %v983, 0.2
      %v992 = vmul.f32 %v984, 0.2
      %v993 = vmul.f32 %v985, 0.2
      %v994 = vmul.f32 %v986, 0.2
      %v995 = vmul.f32 %v987, 0.2
      %v996 = vmax.f32 %v980, %v988
      %v997 = vmax.f32 %v981, %v989
      %v998 = vmax.f32 %v982, %v990
      %v999 = vmax.f32 %v983, %v991
      %v1000 = vmax.f32 %v984, %v992
      %v1001 = vmax.f32 %v985, %v993
      %v1002 = vmax.f32 %v986, %v994
      %v1003 = vmax.f32 %v987, %v995
      %v1004 = vadd.f32 %v996, %v406
      %v1005 = vadd.f32 %v997, %v407
      %v1006 = vadd.f32 %v998, %v408
      %v1007 = vadd.f32 %v999, %v409
      %v1008 = vadd.f32 %v1000, %v410
      %v1009 = vadd.f32 %v1001, %v411
      %v1010 = vadd.f32 %v1002, %v412
      %v1011 = vadd.f32 %v1003, %v413
      %1012 = vmax.xlane.f32.xlu0 %v1004
      %v1013 = vpop.xlane.xlu0 %1012
      %1014 = vmax.xlane.f32.xlu0 %v1005
      %v1015 = vpop.xlane.xlu0 %1014
      %1016 = vmax.xlane.f32.xlu0 %v1006
      %v1017 = vpop.xlane.xlu0 %1016
      %1018 = vmax.xlane.f32.xlu0 %v1007
      %v1019 = vpop.xlane.xlu0 %1018
      %1020 = vmax.xlane.f32.xlu0 %v1008
      %v1021 = vpop.xlane.xlu0 %1020
      %1022 = vmax.xlane.f32.xlu0 %v1009
      %v1023 = vpop.xlane.xlu0 %1022
      %1024 = vmax.xlane.f32.xlu0 %v1010
      %v1025 = vpop.xlane.xlu0 %1024
      %1026 = vmax.xlane.f32.xlu0 %v1011
      %v1027 = vpop.xlane.xlu0 %1026
      %v1028 = vsub.f32 %v1004, %v1013
      %v1029 = vsub.f32 %v1005, %v1015
      %v1030 = vsub.f32 %v1006, %v1017
      %v1031 = vsub.f32 %v1007, %v1019
      %v1032 = vsub.f32 %v1008, %v1021
      %v1033 = vsub.f32 %v1009, %v1023
      %v1034 = vsub.f32 %v1010, %v1025
      %v1035 = vsub.f32 %v1011, %v1027
      %v1036 = vmul.f32 %v1028, 1.442695
      %v1037 = vpow.pop %v1036
      %v1038 = vmul.f32 %v1029, 1.442695
      %v1039 = vpow.pop %v1038
      %v1040 = vmul.f32 %v1030, 1.442695
      %v1041 = vpow.pop %v1040
      %v1042 = vmul.f32 %v1031, 1.442695
      %v1043 = vpow.pop %v1042
      %v1044 = vmul.f32 %v1032, 1.442695
      %v1045 = vpow.pop %v1044
      %v1046 = vmul.f32 %v1033, 1.442695
      %v1047 = vpow.pop %v1046
      %v1048 = vmul.f32 %v1034, 1.442695
      %v1049 = vpow.pop %v1048
      %v1050 = vmul.f32 %v1035, 1.442695
      %v1051 = vpow.pop %v1050
      %v1052 = vmul.f32 %v1037, %v390
      %v1053 = vmul.f32 %v1039, %v391
      %v1054 = vmul.f32 %v1041, %v392
      %v1055 = vmul.f32 %v1043, %v393
      %v1056 = vmul.f32 %v1045, %v394
      %v1057 = vmul.f32 %v1047, %v395
      %v1058 = vmul.f32 %v1049, %v396
      %v1059 = vmul.f32 %v1051, %v397
      %1060 = vadd.xlane.f32.xlu0 %v1052
      %v1061 = vpop.xlane.xlu0 %1060
      %1062 = vadd.xlane.f32.xlu0 %v1053
      %v1063 = vpop.xlane.xlu0 %1062
      %1064 = vadd.xlane.f32.xlu0 %v1054
      %v1065 = vpop.xlane.xlu0 %1064
      %1066 = vadd.xlane.f32.xlu0 %v1055
      %v1067 = vpop.xlane.xlu0 %1066
      %1068 = vadd.xlane.f32.xlu0 %v1056
      %v1069 = vpop.xlane.xlu0 %1068
      %1070 = vadd.xlane.f32.xlu0 %v1057
      %v1071 = vpop.xlane.xlu0 %1070
      %1072 = vadd.xlane.f32.xlu0 %v1058
      %v1073 = vpop.xlane.xlu0 %1072
      %1074 = vadd.xlane.f32.xlu0 %v1059
      %v1075 = vpop.xlane.xlu0 %1074
      %vm1076 = vcmp.gt.f32.partialorder %v1061, 0.0
      %vm1077 = vcmp.gt.f32.partialorder %v1063, 0.0
      %vm1078 = vcmp.gt.f32.partialorder %v1065, 0.0
      %vm1079 = vcmp.gt.f32.partialorder %v1067, 0.0
      %vm1080 = vcmp.gt.f32.partialorder %v1069, 0.0
      %vm1081 = vcmp.gt.f32.partialorder %v1071, 0.0
      %vm1082 = vcmp.gt.f32.partialorder %v1073, 0.0
      %vm1083 = vcmp.gt.f32.partialorder %v1075, 0.0
      %v1084 = vsel %vm1076, %v1061, 1.0
      %v1085 = vsel %vm1077, %v1063, 1.0
      %v1086 = vsel %vm1078, %v1065, 1.0
      %v1087 = vsel %vm1079, %v1067, 1.0
      %v1088 = vsel %vm1080, %v1069, 1.0
      %v1089 = vsel %vm1081, %v1071, 1.0
      %v1090 = vsel %vm1082, %v1073, 1.0
      %v1091 = vsel %vm1083, %v1075, 1.0
      %v1092 = vrcp.pop %v1084
      %v1093 = vrcp.pop %v1085
      %v1094 = vrcp.pop %v1086
      %v1095 = vrcp.pop %v1087
      %v1096 = vrcp.pop %v1088
      %v1097 = vrcp.pop %v1089
      %v1098 = vrcp.pop %v1090
      %v1099 = vrcp.pop %v1091
      %v1100 = vmul.f32 %v1052, %v1092
      %v1101 = vmul.f32 %v1053, %v1093
      %v1102 = vmul.f32 %v1054, %v1094
      %v1103 = vmul.f32 %v1055, %v1095
      %v1104 = vmul.f32 %v1056, %v1096
      %v1105 = vmul.f32 %v1057, %v1097
      %v1106 = vmul.f32 %v1058, %v1098
      %v1107 = vmul.f32 %v1059, %v1099
      %v1108 = vpack.c.bf16 %v1101, %v1100
      %v1109 = vpack.c.bf16 %v1103, %v1102
      %v1110 = vpack.c.bf16 %v1105, %v1104
      %v1111 = vpack.c.bf16 %v1107, %v1106
      %v1112 = vld [vmem:[%s2 + $0x80] sm:$0xf]
      %v1113 = vld [vmem:[%s2 + $0x84] sm:$0xf]
      %v1114 = vld [vmem:[%s2 + $0x88] sm:$0xf]
      %v1115 = vld [vmem:[%s2 + $0x8c] sm:$0xf]
      %v1116 = vld [vmem:[%s2 + $0x90] sm:$0xf]
      %v1117 = vld [vmem:[%s2 + $0x94] sm:$0xf]
      %v1118 = vld [vmem:[%s2 + $0x98] sm:$0xf]
      %v1119 = vld [vmem:[%s2 + $0x9c] sm:$0xf]
      %v1120 = vld [vmem:[%s2 + $0xa0] sm:$0xf]
      %v1121 = vld [vmem:[%s2 + $0xa4] sm:$0xf]
      %v1122 = vld [vmem:[%s2 + $0xa8] sm:$0xf]
      %v1123 = vld [vmem:[%s2 + $0xac] sm:$0xf]
      %v1124 = vld [vmem:[%s2 + $0xb0] sm:$0xf]
      %v1125 = vld [vmem:[%s2 + $0xb4] sm:$0xf]
      %v1126 = vld [vmem:[%s2 + $0xb8] sm:$0xf]
      %v1127 = vld [vmem:[%s2 + $0xbc] sm:$0xf]
      %v1144 = vunpack.c.l.b16 %v1112
      %v1145 = vunpack.c.l.b16 %v1113
      %v1146 = vunpack.c.l.b16 %v1114
      %v1147 = vunpack.c.l.b16 %v1115
      %v1148 = vunpack.c.l.b16 %v1116
      %v1149 = vunpack.c.l.b16 %v1117
      %v1150 = vunpack.c.l.b16 %v1118
      %v1151 = vunpack.c.l.b16 %v1119
      %v1152 = vunpack.c.l.b16 %v1120
      %v1153 = vunpack.c.l.b16 %v1121
      %v1154 = vunpack.c.l.b16 %v1122
      %v1155 = vunpack.c.l.b16 %v1123
      %v1156 = vunpack.c.l.b16 %v1124
      %v1157 = vunpack.c.l.b16 %v1125
      %v1158 = vunpack.c.l.b16 %v1126
      %v1159 = vunpack.c.l.b16 %v1127
      %v1160 = vpack.c.b16 %v1145, %v1144
      %v1161 = vpack.c.b16 %v1147, %v1146
      %v1162 = vpack.c.b16 %v1149, %v1148
      %v1163 = vpack.c.b16 %v1151, %v1150
      %v1164 = vpack.c.b16 %v1153, %v1152
      %v1165 = vpack.c.b16 %v1155, %v1154
      %v1166 = vpack.c.b16 %v1157, %v1156
      %v1167 = vpack.c.b16 %v1159, %v1158
      %1176 = vmatpush.bf16.msra.mxu0 %v1167
      %1177 = vmatpush.bf16.msra.mxu0 %v1166
      %1178 = vmatpush.bf16.msra.mxu0 %v1165
      %1179 = vmatpush.bf16.msra.mxu0 %v1164
      %1180 = vmatpush.bf16.msra.mxu0 %v1163
      %1181 = vmatpush.bf16.msra.mxu0 %v1162
      %1182 = vmatpush.bf16.msra.mxu0 %v1161
      %1183 = vmatpush.bf16.msra.mxu0 %v1160
      %1184 = vmatmul.bf16.gmra.mxu0 %v1108
      %v1185 = vpop.f32.mrf.mxu0
      %v1186 = vadd.f32 0.0, %v1185
      %v1187 = vpop.f32.mrf.mxu0
      %v1188 = vadd.f32 0.0, %v1187
      %1189 = vmatmul.bf16.gmra.mxu0 %v1109
      %v1190 = vpop.f32.mrf.mxu0
      %v1191 = vadd.f32 0.0, %v1190
      %v1192 = vpop.f32.mrf.mxu0
      %v1193 = vadd.f32 0.0, %v1192
      %1194 = vmatmul.bf16.gmra.mxu0 %v1110
      %v1195 = vpop.f32.mrf.mxu0
      %v1196 = vadd.f32 0.0, %v1195
      %v1197 = vpop.f32.mrf.mxu0
      %v1198 = vadd.f32 0.0, %v1197
      %1199 = vmatmul.bf16.gmra.mxu0 %v1111
      %v1200 = vpop.f32.mrf.mxu0
      %v1201 = vadd.f32 0.0, %v1200
      %v1202 = vpop.f32.mrf.mxu0
      %v1203 = vadd.f32 0.0, %v1202
      %1204 = vdwg.mxu0
      %v1205 = vadd.f32 %v928, %v1186
      %v1206 = vadd.f32 %v930, %v1188
      %v1207 = vadd.f32 %v933, %v1191
      %v1208 = vadd.f32 %v935, %v1193
      %v1209 = vadd.f32 %v938, %v1196
      %v1210 = vadd.f32 %v940, %v1198
      %v1211 = vadd.f32 %v943, %v1201
      %v1212 = vadd.f32 %v945, %v1203
      %1213 = vset.pattern.permute.xlu0 3
      %1214 = vperm.xlu0 %1213, %v414
      %v1215 = vpop.permute.xlu0 %1214
      %1217 = vset.pattern.permute.xlu0 3
      %1218 = vperm.xlu0 %1217, %v415
      %v1219 = vpop.permute.xlu0 %1218
      %1221 = vset.pattern.permute.xlu0 3
      %1222 = vperm.xlu0 %1221, %v416
      %v1223 = vpop.permute.xlu0 %1222
      %1225 = vset.pattern.permute.xlu0 3
      %1226 = vperm.xlu0 %1225, %v417
      %v1227 = vpop.permute.xlu0 %1226
      %1229 = vset.pattern.permute.xlu0 3
      %1230 = vperm.xlu0 %1229, %v418
      %v1231 = vpop.permute.xlu0 %1230
      %1233 = vset.pattern.permute.xlu0 3
      %1234 = vperm.xlu0 %1233, %v419
      %v1235 = vpop.permute.xlu0 %1234
      %1237 = vset.pattern.permute.xlu0 3
      %1238 = vperm.xlu0 %1237, %v420
      %v1239 = vpop.permute.xlu0 %1238
      %1241 = vset.pattern.permute.xlu0 3
      %1242 = vperm.xlu0 %1241, %v421
      %v1243 = vpop.permute.xlu0 %1242
      %v1245 = vperm.slane %v422, 3
      %v1246 = vadd.f32 %v1215, %v1245
      %v1247 = vadd.f32 %v1219, %v1245
      %v1248 = vadd.f32 %v1223, %v1245
      %v1249 = vadd.f32 %v1227, %v1245
      %v1250 = vadd.f32 %v1231, %v1245
      %v1251 = vadd.f32 %v1235, %v1245
      %v1252 = vadd.f32 %v1239, %v1245
      %v1253 = vadd.f32 %v1243, %v1245
      %v1254 = vmul.f32 %v1246, 0.2
      %v1255 = vmul.f32 %v1247, 0.2
      %v1256 = vmul.f32 %v1248, 0.2
      %v1257 = vmul.f32 %v1249, 0.2
      %v1258 = vmul.f32 %v1250, 0.2
      %v1259 = vmul.f32 %v1251, 0.2
      %v1260 = vmul.f32 %v1252, 0.2
      %v1261 = vmul.f32 %v1253, 0.2
      %v1262 = vmax.f32 %v1246, %v1254
      %v1263 = vmax.f32 %v1247, %v1255
      %v1264 = vmax.f32 %v1248, %v1256
      %v1265 = vmax.f32 %v1249, %v1257
      %v1266 = vmax.f32 %v1250, %v1258
      %v1267 = vmax.f32 %v1251, %v1259
      %v1268 = vmax.f32 %v1252, %v1260
      %v1269 = vmax.f32 %v1253, %v1261
      %v1270 = vadd.f32 %v1262, %v406
      %v1271 = vadd.f32 %v1263, %v407
      %v1272 = vadd.f32 %v1264, %v408
      %v1273 = vadd.f32 %v1265, %v409
      %v1274 = vadd.f32 %v1266, %v410
      %v1275 = vadd.f32 %v1267, %v411
      %v1276 = vadd.f32 %v1268, %v412
      %v1277 = vadd.f32 %v1269, %v413
      %1278 = vmax.xlane.f32.xlu0 %v1270
      %v1279 = vpop.xlane.xlu0 %1278
      %1280 = vmax.xlane.f32.xlu0 %v1271
      %v1281 = vpop.xlane.xlu0 %1280
      %1282 = vmax.xlane.f32.xlu0 %v1272
      %v1283 = vpop.xlane.xlu0 %1282
      %1284 = vmax.xlane.f32.xlu0 %v1273
      %v1285 = vpop.xlane.xlu0 %1284
      %1286 = vmax.xlane.f32.xlu0 %v1274
      %v1287 = vpop.xlane.xlu0 %1286
      %1288 = vmax.xlane.f32.xlu0 %v1275
      %v1289 = vpop.xlane.xlu0 %1288
      %1290 = vmax.xlane.f32.xlu0 %v1276
      %v1291 = vpop.xlane.xlu0 %1290
      %1292 = vmax.xlane.f32.xlu0 %v1277
      %v1293 = vpop.xlane.xlu0 %1292
      %v1294 = vsub.f32 %v1270, %v1279
      %v1295 = vsub.f32 %v1271, %v1281
      %v1296 = vsub.f32 %v1272, %v1283
      %v1297 = vsub.f32 %v1273, %v1285
      %v1298 = vsub.f32 %v1274, %v1287
      %v1299 = vsub.f32 %v1275, %v1289
      %v1300 = vsub.f32 %v1276, %v1291
      %v1301 = vsub.f32 %v1277, %v1293
      %v1302 = vmul.f32 %v1294, 1.442695
      %v1303 = vpow.pop %v1302
      %v1304 = vmul.f32 %v1295, 1.442695
      %v1305 = vpow.pop %v1304
      %v1306 = vmul.f32 %v1296, 1.442695
      %v1307 = vpow.pop %v1306
      %v1308 = vmul.f32 %v1297, 1.442695
      %v1309 = vpow.pop %v1308
      %v1310 = vmul.f32 %v1298, 1.442695
      %v1311 = vpow.pop %v1310
      %v1312 = vmul.f32 %v1299, 1.442695
      %v1313 = vpow.pop %v1312
      %v1314 = vmul.f32 %v1300, 1.442695
      %v1315 = vpow.pop %v1314
      %v1316 = vmul.f32 %v1301, 1.442695
      %v1317 = vpow.pop %v1316
      %v1318 = vmul.f32 %v1303, %v390
      %v1319 = vmul.f32 %v1305, %v391
      %v1320 = vmul.f32 %v1307, %v392
      %v1321 = vmul.f32 %v1309, %v393
      %v1322 = vmul.f32 %v1311, %v394
      %v1323 = vmul.f32 %v1313, %v395
      %v1324 = vmul.f32 %v1315, %v396
      %v1325 = vmul.f32 %v1317, %v397
      %1326 = vadd.xlane.f32.xlu0 %v1318
      %v1327 = vpop.xlane.xlu0 %1326
      %1328 = vadd.xlane.f32.xlu0 %v1319
      %v1329 = vpop.xlane.xlu0 %1328
      %1330 = vadd.xlane.f32.xlu0 %v1320
      %v1331 = vpop.xlane.xlu0 %1330
      %1332 = vadd.xlane.f32.xlu0 %v1321
      %v1333 = vpop.xlane.xlu0 %1332
      %1334 = vadd.xlane.f32.xlu0 %v1322
      %v1335 = vpop.xlane.xlu0 %1334
      %1336 = vadd.xlane.f32.xlu0 %v1323
      %v1337 = vpop.xlane.xlu0 %1336
      %1338 = vadd.xlane.f32.xlu0 %v1324
      %v1339 = vpop.xlane.xlu0 %1338
      %1340 = vadd.xlane.f32.xlu0 %v1325
      %v1341 = vpop.xlane.xlu0 %1340
      %vm1342 = vcmp.gt.f32.partialorder %v1327, 0.0
      %vm1343 = vcmp.gt.f32.partialorder %v1329, 0.0
      %vm1344 = vcmp.gt.f32.partialorder %v1331, 0.0
      %vm1345 = vcmp.gt.f32.partialorder %v1333, 0.0
      %vm1346 = vcmp.gt.f32.partialorder %v1335, 0.0
      %vm1347 = vcmp.gt.f32.partialorder %v1337, 0.0
      %vm1348 = vcmp.gt.f32.partialorder %v1339, 0.0
      %vm1349 = vcmp.gt.f32.partialorder %v1341, 0.0
      %v1350 = vsel %vm1342, %v1327, 1.0
      %v1351 = vsel %vm1343, %v1329, 1.0
      %v1352 = vsel %vm1344, %v1331, 1.0
      %v1353 = vsel %vm1345, %v1333, 1.0
      %v1354 = vsel %vm1346, %v1335, 1.0
      %v1355 = vsel %vm1347, %v1337, 1.0
      %v1356 = vsel %vm1348, %v1339, 1.0
      %v1357 = vsel %vm1349, %v1341, 1.0
      %v1358 = vrcp.pop %v1350
      %v1359 = vrcp.pop %v1351
      %v1360 = vrcp.pop %v1352
      %v1361 = vrcp.pop %v1353
      %v1362 = vrcp.pop %v1354
      %v1363 = vrcp.pop %v1355
      %v1364 = vrcp.pop %v1356
      %v1365 = vrcp.pop %v1357
      %v1366 = vmul.f32 %v1318, %v1358
      %v1367 = vmul.f32 %v1319, %v1359
      %v1368 = vmul.f32 %v1320, %v1360
      %v1369 = vmul.f32 %v1321, %v1361
      %v1370 = vmul.f32 %v1322, %v1362
      %v1371 = vmul.f32 %v1323, %v1363
      %v1372 = vmul.f32 %v1324, %v1364
      %v1373 = vmul.f32 %v1325, %v1365
      %v1374 = vpack.c.bf16 %v1367, %v1366
      %v1375 = vpack.c.bf16 %v1369, %v1368
      %v1376 = vpack.c.bf16 %v1371, %v1370
      %v1377 = vpack.c.bf16 %v1373, %v1372
      %v1378 = vld [vmem:[%s2 + $0xc0] sm:$0xf]
      %v1379 = vld [vmem:[%s2 + $0xc4] sm:$0xf]
      %v1380 = vld [vmem:[%s2 + $0xc8] sm:$0xf]
      %v1381 = vld [vmem:[%s2 + $0xcc] sm:$0xf]
      %v1382 = vld [vmem:[%s2 + $0xd0] sm:$0xf]
      %v1383 = vld [vmem:[%s2 + $0xd4] sm:$0xf]
      %v1384 = vld [vmem:[%s2 + $0xd8] sm:$0xf]
      %v1385 = vld [vmem:[%s2 + $0xdc] sm:$0xf]
      %v1386 = vld [vmem:[%s2 + $0xe0] sm:$0xf]
      %v1387 = vld [vmem:[%s2 + $0xe4] sm:$0xf]
      %v1388 = vld [vmem:[%s2 + $0xe8] sm:$0xf]
      %v1389 = vld [vmem:[%s2 + $0xec] sm:$0xf]
      %v1390 = vld [vmem:[%s2 + $0xf0] sm:$0xf]
      %v1391 = vld [vmem:[%s2 + $0xf4] sm:$0xf]
      %v1392 = vld [vmem:[%s2 + $0xf8] sm:$0xf]
      %v1393 = vld [vmem:[%s2 + $0xfc] sm:$0xf]
      %v1410 = vunpack.c.l.b16 %v1378
      %v1411 = vunpack.c.l.b16 %v1379
      %v1412 = vunpack.c.l.b16 %v1380
      %v1413 = vunpack.c.l.b16 %v1381
      %v1414 = vunpack.c.l.b16 %v1382
      %v1415 = vunpack.c.l.b16 %v1383
      %v1416 = vunpack.c.l.b16 %v1384
      %v1417 = vunpack.c.l.b16 %v1385
      %v1418 = vunpack.c.l.b16 %v1386
      %v1419 = vunpack.c.l.b16 %v1387
      %v1420 = vunpack.c.l.b16 %v1388
      %v1421 = vunpack.c.l.b16 %v1389
      %v1422 = vunpack.c.l.b16 %v1390
      %v1423 = vunpack.c.l.b16 %v1391
      %v1424 = vunpack.c.l.b16 %v1392
      %v1425 = vunpack.c.l.b16 %v1393
      %v1426 = vpack.c.b16 %v1411, %v1410
      %v1427 = vpack.c.b16 %v1413, %v1412
      %v1428 = vpack.c.b16 %v1415, %v1414
      %v1429 = vpack.c.b16 %v1417, %v1416
      %v1430 = vpack.c.b16 %v1419, %v1418
      %v1431 = vpack.c.b16 %v1421, %v1420
      %v1432 = vpack.c.b16 %v1423, %v1422
      %v1433 = vpack.c.b16 %v1425, %v1424
      %1442 = vmatpush.bf16.msra.mxu0 %v1433
      %1443 = vmatpush.bf16.msra.mxu0 %v1432
      %1444 = vmatpush.bf16.msra.mxu0 %v1431
      %1445 = vmatpush.bf16.msra.mxu0 %v1430
      %1446 = vmatpush.bf16.msra.mxu0 %v1429
      %1447 = vmatpush.bf16.msra.mxu0 %v1428
      %1448 = vmatpush.bf16.msra.mxu0 %v1427
      %1449 = vmatpush.bf16.msra.mxu0 %v1426
      %1450 = vmatmul.bf16.gmra.mxu0 %v1374
      %v1451 = vpop.f32.mrf.mxu0
      %v1452 = vadd.f32 0.0, %v1451
      %v1453 = vpop.f32.mrf.mxu0
      %v1454 = vadd.f32 0.0, %v1453
      %1455 = vmatmul.bf16.gmra.mxu0 %v1375
      %v1456 = vpop.f32.mrf.mxu0
      %v1457 = vadd.f32 0.0, %v1456
      %v1458 = vpop.f32.mrf.mxu0
      %v1459 = vadd.f32 0.0, %v1458
      %1460 = vmatmul.bf16.gmra.mxu0 %v1376
      %v1461 = vpop.f32.mrf.mxu0
      %v1462 = vadd.f32 0.0, %v1461
      %v1463 = vpop.f32.mrf.mxu0
      %v1464 = vadd.f32 0.0, %v1463
      %1465 = vmatmul.bf16.gmra.mxu0 %v1377
      %v1466 = vpop.f32.mrf.mxu0
      %v1467 = vadd.f32 0.0, %v1466
      %v1468 = vpop.f32.mrf.mxu0
      %v1469 = vadd.f32 0.0, %v1468
      %1470 = vdwg.mxu0
      %v1471 = vadd.f32 %v1205, %v1452
      %v1472 = vadd.f32 %v1206, %v1454
      %v1473 = vadd.f32 %v1207, %v1457
      %v1474 = vadd.f32 %v1208, %v1459
      %v1475 = vadd.f32 %v1209, %v1462
      %v1476 = vadd.f32 %v1210, %v1464
      %v1477 = vadd.f32 %v1211, %v1467
      %v1478 = vadd.f32 %v1212, %v1469
      %v1479 = vmul.f32 %v1471, 0.25
      %v1480 = vmul.f32 %v1472, 0.25
      %v1481 = vmul.f32 %v1473, 0.25
      %v1482 = vmul.f32 %v1474, 0.25
      %v1483 = vmul.f32 %v1475, 0.25
      %v1484 = vmul.f32 %v1476, 0.25
      %v1485 = vmul.f32 %v1477, 0.25
      %v1486 = vmul.f32 %v1478, 0.25
      %v1487 = vld [vmem:[%s5] sm:$0x1]
      %v1489 = vperm.slane %v1487, 0
      %v1491 = vadd.f32 %v1479, %v1489
      %v1492 = vadd.f32 %v1480, %v1489
      %v1493 = vadd.f32 %v1481, %v1489
      %v1494 = vadd.f32 %v1482, %v1489
      %v1495 = vadd.f32 %v1483, %v1489
      %v1496 = vadd.f32 %v1484, %v1489
      %v1497 = vadd.f32 %v1485, %v1489
      %v1498 = vadd.f32 %v1486, %v1489
      %v1499 = vmax.f32 %v1491, 0.0
      %v1500 = vmax.f32 %v1492, 0.0
      %v1501 = vmax.f32 %v1493, 0.0
      %v1502 = vmax.f32 %v1494, 0.0
      %v1503 = vmax.f32 %v1495, 0.0
      %v1504 = vmax.f32 %v1496, 0.0
      %v1505 = vmax.f32 %v1497, 0.0
      %v1506 = vmax.f32 %v1498, 0.0
      %v1507 = vpack.c.bf16 %v1500, %v1499
      %v1508 = vpack.c.bf16 %v1502, %v1501
      %v1509 = vpack.c.bf16 %v1504, %v1503
      %v1510 = vpack.c.bf16 %v1506, %v1505
      %v1511 = vld [vmem:[%s6] sm:$0xf]
      %v1512 = vld [vmem:[%s6 + $0x4] sm:$0xf]
      %v1513 = vld [vmem:[%s6 + $0x8] sm:$0xf]
      %v1514 = vld [vmem:[%s6 + $0xc] sm:$0xf]
      %v1515 = vld [vmem:[%s6 + $0x10] sm:$0xf]
      %v1516 = vld [vmem:[%s6 + $0x14] sm:$0xf]
      %v1517 = vld [vmem:[%s6 + $0x18] sm:$0xf]
      %v1518 = vld [vmem:[%s6 + $0x1c] sm:$0xf]
      %v1519 = vld [vmem:[%s6 + $0x20] sm:$0xf]
      %v1520 = vld [vmem:[%s6 + $0x24] sm:$0xf]
      %v1521 = vld [vmem:[%s6 + $0x28] sm:$0xf]
      %v1522 = vld [vmem:[%s6 + $0x2c] sm:$0xf]
      %v1523 = vld [vmem:[%s6 + $0x30] sm:$0xf]
      %v1524 = vld [vmem:[%s6 + $0x34] sm:$0xf]
      %v1525 = vld [vmem:[%s6 + $0x38] sm:$0xf]
      %v1526 = vld [vmem:[%s6 + $0x3c] sm:$0xf]
      %v1527 = vld [vmem:[%s360] sm:$0xf]
      %v1528 = vld [vmem:[%s360 + $0x4] sm:$0xf]
      %v1529 = vld [vmem:[%s360 + $0x8] sm:$0xf]
      %v1530 = vld [vmem:[%s360 + $0xc] sm:$0xf]
      %v1531 = vld [vmem:[%s360 + $0x10] sm:$0xf]
      %v1532 = vld [vmem:[%s360 + $0x14] sm:$0xf]
      %v1533 = vld [vmem:[%s360 + $0x18] sm:$0xf]
      %v1534 = vld [vmem:[%s360 + $0x1c] sm:$0xf]
      %v1535 = vld [vmem:[%s7] sm:$0xf]
      %v1536 = vld [vmem:[%s7 + $0x4] sm:$0xf]
      %v1537 = vld [vmem:[%s7 + $0x8] sm:$0xf]
      %v1538 = vld [vmem:[%s7 + $0xc] sm:$0xf]
      %v1539 = vld [vmem:[%s7 + $0x10] sm:$0xf]
      %v1540 = vld [vmem:[%s7 + $0x14] sm:$0xf]
      %v1541 = vld [vmem:[%s7 + $0x18] sm:$0xf]
      %v1542 = vld [vmem:[%s7 + $0x1c] sm:$0xf]
      %v1543 = vld [vmem:[%s7 + $0x20] sm:$0xf]
      %v1544 = vld [vmem:[%s7 + $0x24] sm:$0xf]
      %v1545 = vld [vmem:[%s7 + $0x28] sm:$0xf]
      %v1546 = vld [vmem:[%s7 + $0x2c] sm:$0xf]
      %v1547 = vld [vmem:[%s7 + $0x30] sm:$0xf]
      %v1548 = vld [vmem:[%s7 + $0x34] sm:$0xf]
      %v1549 = vld [vmem:[%s7 + $0x38] sm:$0xf]
      %v1550 = vld [vmem:[%s7 + $0x3c] sm:$0xf]
      %v1559 = vunpack.c.l.b16 %v1527
      %v1560 = vunpack.c.l.b16 %v1528
      %v1561 = vunpack.c.l.b16 %v1529
      %v1562 = vunpack.c.l.b16 %v1530
      %v1563 = vunpack.c.l.b16 %v1531
      %v1564 = vunpack.c.l.b16 %v1532
      %v1565 = vunpack.c.l.b16 %v1533
      %v1566 = vunpack.c.l.b16 %v1534
      %v1567 = vpack.c.b16 %v1560, %v1559
      %v1568 = vpack.c.b16 %v1562, %v1561
      %v1569 = vpack.c.b16 %v1564, %v1563
      %v1570 = vpack.c.b16 %v1566, %v1565
      %v1591 = vunpack.c.l.b16 %v1535
      %v1592 = vunpack.c.l.b16 %v1536
      %v1593 = vunpack.c.l.b16 %v1537
      %v1594 = vunpack.c.l.b16 %v1538
      %v1595 = vunpack.c.l.b16 %v1539
      %v1596 = vunpack.c.l.b16 %v1540
      %v1597 = vunpack.c.l.b16 %v1541
      %v1598 = vunpack.c.l.b16 %v1542
      %v1599 = vunpack.c.l.b16 %v1543
      %v1600 = vunpack.c.l.b16 %v1544
      %v1601 = vunpack.c.l.b16 %v1545
      %v1602 = vunpack.c.l.b16 %v1546
      %v1603 = vunpack.c.l.b16 %v1547
      %v1604 = vunpack.c.l.b16 %v1548
      %v1605 = vunpack.c.l.b16 %v1549
      %v1606 = vunpack.c.l.b16 %v1550
      %v1607 = vpack.c.b16 %v1592, %v1591
      %v1608 = vpack.c.b16 %v1594, %v1593
      %v1609 = vpack.c.b16 %v1596, %v1595
      %v1610 = vpack.c.b16 %v1598, %v1597
      %v1611 = vpack.c.b16 %v1600, %v1599
      %v1612 = vpack.c.b16 %v1602, %v1601
      %v1613 = vpack.c.b16 %v1604, %v1603
      %v1614 = vpack.c.b16 %v1606, %v1605
      %1623 = vmatpush.bf16.msra.mxu0 %v1614
      %1624 = vmatpush.bf16.msra.mxu0 %v1613
      %1625 = vmatpush.bf16.msra.mxu0 %v1612
      %1626 = vmatpush.bf16.msra.mxu0 %v1611
      %1627 = vmatpush.bf16.msra.mxu0 %v1610
      %1628 = vmatpush.bf16.msra.mxu0 %v1609
      %1629 = vmatpush.bf16.msra.mxu0 %v1608
      %1630 = vmatpush.bf16.msra.mxu0 %v1607
      %1631 = vmatmul.bf16.gmra.mxu0 %v1567
      %v1632 = vpop.f32.mrf.mxu0
      %v1633 = vadd.f32 0.0, %v1632
      %v1634 = vpop.f32.mrf.mxu0
      %v1635 = vadd.f32 0.0, %v1634
      %1636 = vmatmul.bf16.gmra.mxu0 %v1568
      %v1637 = vpop.f32.mrf.mxu0
      %v1638 = vadd.f32 0.0, %v1637
      %v1639 = vpop.f32.mrf.mxu0
      %v1640 = vadd.f32 0.0, %v1639
      %1641 = vmatmul.bf16.gmra.mxu0 %v1569
      %v1642 = vpop.f32.mrf.mxu0
      %v1643 = vadd.f32 0.0, %v1642
      %v1644 = vpop.f32.mrf.mxu0
      %v1645 = vadd.f32 0.0, %v1644
      %1646 = vmatmul.bf16.gmra.mxu0 %v1570
      %v1647 = vpop.f32.mrf.mxu0
      %v1648 = vadd.f32 0.0, %v1647
      %v1649 = vpop.f32.mrf.mxu0
      %v1650 = vadd.f32 0.0, %v1649
      %1651 = vdwg.mxu0
      %v1668 = vunpack.c.l.b16 %v1511
      %v1669 = vunpack.c.l.b16 %v1512
      %v1670 = vunpack.c.l.b16 %v1513
      %v1671 = vunpack.c.l.b16 %v1514
      %v1672 = vunpack.c.l.b16 %v1515
      %v1673 = vunpack.c.l.b16 %v1516
      %v1674 = vunpack.c.l.b16 %v1517
      %v1675 = vunpack.c.l.b16 %v1518
      %v1676 = vunpack.c.l.b16 %v1519
      %v1677 = vunpack.c.l.b16 %v1520
      %v1678 = vunpack.c.l.b16 %v1521
      %v1679 = vunpack.c.l.b16 %v1522
      %v1680 = vunpack.c.l.b16 %v1523
      %v1681 = vunpack.c.l.b16 %v1524
      %v1682 = vunpack.c.l.b16 %v1525
      %v1683 = vunpack.c.l.b16 %v1526
      %v1684 = vpack.c.b16 %v1669, %v1668
      %v1685 = vpack.c.b16 %v1671, %v1670
      %v1686 = vpack.c.b16 %v1673, %v1672
      %v1687 = vpack.c.b16 %v1675, %v1674
      %v1688 = vpack.c.b16 %v1677, %v1676
      %v1689 = vpack.c.b16 %v1679, %v1678
      %v1690 = vpack.c.b16 %v1681, %v1680
      %v1691 = vpack.c.b16 %v1683, %v1682
      %1700 = vmatpush.bf16.msra.mxu0 %v1691
      %1701 = vmatpush.bf16.msra.mxu0 %v1690
      %1702 = vmatpush.bf16.msra.mxu0 %v1689
      %1703 = vmatpush.bf16.msra.mxu0 %v1688
      %1704 = vmatpush.bf16.msra.mxu0 %v1687
      %1705 = vmatpush.bf16.msra.mxu0 %v1686
      %1706 = vmatpush.bf16.msra.mxu0 %v1685
      %1707 = vmatpush.bf16.msra.mxu0 %v1684
      %1708 = vmatmul.bf16.gmra.mxu0 %v1507
      %v1709 = vpop.f32.mrf.mxu0
      %v1710 = vadd.f32 %v1633, %v1709
      %v1711 = vpop.f32.mrf.mxu0
      %v1712 = vadd.f32 %v1635, %v1711
      %1713 = vmatmul.bf16.gmra.mxu0 %v1508
      %v1714 = vpop.f32.mrf.mxu0
      %v1715 = vadd.f32 %v1638, %v1714
      %v1716 = vpop.f32.mrf.mxu0
      %v1717 = vadd.f32 %v1640, %v1716
      %1718 = vmatmul.bf16.gmra.mxu0 %v1509
      %v1719 = vpop.f32.mrf.mxu0
      %v1720 = vadd.f32 %v1643, %v1719
      %v1721 = vpop.f32.mrf.mxu0
      %v1722 = vadd.f32 %v1645, %v1721
      %1723 = vmatmul.bf16.gmra.mxu0 %v1510
      %v1724 = vpop.f32.mrf.mxu0
      %v1725 = vadd.f32 %v1648, %v1724
      %v1726 = vpop.f32.mrf.mxu0
      %v1727 = vadd.f32 %v1650, %v1726
      %1728 = vdwg.mxu0
      %v1729 = vld [vmem:[%s8] sm:$0x1]
      %v1731 = vperm.slane %v1729, 0
      %v1733 = vadd.f32 %v1710, %v1731
      %v1734 = vadd.f32 %v1712, %v1731
      %v1735 = vadd.f32 %v1715, %v1731
      %v1736 = vadd.f32 %v1717, %v1731
      %v1737 = vadd.f32 %v1720, %v1731
      %v1738 = vadd.f32 %v1722, %v1731
      %v1739 = vadd.f32 %v1725, %v1731
      %v1740 = vadd.f32 %v1727, %v1731
      %v1741 = vpack.c.bf16 %v1733, %v1733
      %v1742 = vpack.c.bf16 %v1734, %v1734
      %v1743 = vpack.c.bf16 %v1735, %v1735
      %v1744 = vpack.c.bf16 %v1736, %v1736
      %v1745 = vpack.c.bf16 %v1737, %v1737
      %v1746 = vpack.c.bf16 %v1738, %v1738
      %v1747 = vpack.c.bf16 %v1739, %v1739
      %v1748 = vpack.c.bf16 %v1740, %v1740
      %1749 = vst [vmem:[%s378] sm:$0xf] %v1741
      %1750 = vst [vmem:[%s378 + $0x4] sm:$0xf] %v1742
      %1751 = vst [vmem:[%s378 + $0x8] sm:$0xf] %v1743
      %1752 = vst [vmem:[%s378 + $0xc] sm:$0xf] %v1744
      %1753 = vst [vmem:[%s378 + $0x10] sm:$0xf] %v1745
      %1754 = vst [vmem:[%s378 + $0x14] sm:$0xf] %v1746
      %1755 = vst [vmem:[%s378 + $0x18] sm:$0xf] %v1747
      %1756 = vst [vmem:[%s378 + $0x1c] sm:$0xf] %v1748
      %s1757 = smul.u32 8, %s20
      %p1758 = scmp.lt.s32.totalorder %s1757, 15
      %s1759 = scalar_select %p1758, %s1757, 15
      %s1760 = smul.addr %s1759, 4
      %s1761 = scalar_lea.vmem %s9, %s1760
      // Predicated region
      $region57: #{gnn_forward.2} parent=55 // pred_check
        %p1762 = pneg %p242
      $region58: #{gnn_forward.2} parent=55 // pred_check_branch
        %1764 = sbr.rel (%p1762) target = $region60
      $region59: #{gnn_forward.2} parent=55 // pred_region
        %s1765 = smul.u32 8, %s20
      $region60: #{gnn_forward.2} parent=55 // pred_fallthru
        _
    $region56: #{gnn_forward.2} parent=5 // pred_fallthru
      _
    %p1766 = scmp.le.s32.totalorder 2, %s15
    // Predicated region
    $region61: #{gnn_forward.2} parent=5 // pred_check
      %p1767 = pneg %p1766
    $region62: #{gnn_forward.2} parent=5 // pred_check_branch
      %1769 = sbr.rel (%p1767) target = $region64
    $region63: #{gnn_forward.2} parent=5 // pred_region
      %s1770 = ssub.s32 %s15, 2
      // Predicated region
      $region65: #{gnn_forward.2} parent=63 // pred_check
        %p1771 = pneg %p248
      $region66: #{gnn_forward.2} parent=63 // pred_check_branch
        %1773 = sbr.rel (%p1771) target = $region68
      $region67: #{gnn_forward.2} parent=63 // pred_region
        %s1774 = smul.u32 8, %s21
        %p1775 = scmp.lt.s32.totalorder %s1774, 15
        %s1776 = scalar_select %p1775, %s1774, 15
        %s1777 = smul.addr %s1776, 4
        %s1778 = scalar_lea.vmem %s9, %s1777
      $region68: #{gnn_forward.2} parent=63 // pred_fallthru
        _
    $region64: #{gnn_forward.2} parent=5 // pred_fallthru
      _
  $region6: #{gnn_forward.2} parent=0 // loop_footer
    %s19 = sadd.s32 1, %s15
  $region7: #{gnn_forward.2} parent=0 // loop_footer_branch
    %14 = sbr.rel target = $region3
  $region8: #{gnn_forward.2} parent=0 // loop_exit
    _

</llo_original>
